<compile_context>
chip_gen: v6e
topology: v6e:2x2x1
jax: 0.10.0
libtpu: 0.0.40
codegen_flags: <defaults>
</compile_context>

<pallas_src>
import math
import functools

import jax
import jax.numpy as jnp
from jax.experimental import pallas as pl
from jax.experimental.pallas import tpu as pltpu

# Model dims (from the PyTorch module)
D_IN, D_H1, D_H3, D_H4, D_OUT = 799, 450, 450, 15, 2


def _round_up(x, m):
    return ((x + m - 1) // m) * m


def _mlp_kernel(x_ref, w1_ref, b1_ref, wc_ref, bc_ref, o_ref):
    # fc1 on the MXU: bf16 x bf16 -> fp32 accumulate; bias + ReLU in fp32 (VPU).
    # astype is a no-op when the producer already emits bf16.
    x = x_ref[...].astype(jnp.bfloat16)
    h1 = jnp.dot(x, w1_ref[...], preferred_element_type=jnp.float32)
    h1 = jnp.maximum(h1 + b1_ref[...], 0.0)
    # Folded fc3 @ fc4 @ fc5 (exact fold: no activations between them).
    out = jnp.dot(h1.astype(jnp.bfloat16), wc_ref[...],
                  preferred_element_type=jnp.float32)
    o_ref[...] = (out + bc_ref[...]).astype(o_ref.dtype)


def _choose_tiling(B, tb_max):
    """Pick (TB, B_pad): TB multiple of 8, >=2 grid steps when the batch allows
    (v7x megacore), minimal padded rows, bumped to 128-multiple when free."""
    B8 = _round_up(B, 8)
    n_steps = max(2 if B8 >= 16 else 1, pl.cdiv(B8, tb_max))
    TB = _round_up(pl.cdiv(B8, n_steps), 8)
    B_pad = TB * pl.cdiv(B8, TB)
    # Bump to a 128-multiple (MXU M-dim fill) only if it adds no padded rows.
    TB128 = _round_up(TB, 128)
    if TB128 * pl.cdiv(B8, TB128) <= B_pad:
        TB = TB128
        B_pad = TB * pl.cdiv(B8, TB)
    return TB, B_pad


def _resident_spec(shape):
    # Constant block index -> DMA'd exactly once and VMEM-resident for the
    # whole grid; single-buffered (double-buffering it would only waste VMEM).
    return pl.BlockSpec(shape, lambda i: (0, 0), pipeline_mode=pl.Buffered(1))


@functools.partial(jax.jit, static_argnames=("tb",))
def net_forward(x, params, *, tb=1024):
    """x: (B, 799) bf16 (preferred) or fp32.
    params: (w1_bf16, b1_f32, wc_bf16, bc_f32) from fold_params()."""
    w1, b1, wc, bc = params
    B = x.shape[0]
    TB, B_pad = _choose_tiling(B, tb)
    if B_pad != B:
        x = jnp.pad(x, ((0, B_pad - B), (0, 0)))

    x_bytes = jnp.dtype(x.dtype).itemsize
    cost = pl.CostEstimate(
        flops=2 * B_pad * D_IN * D_H1 + 2 * B_pad * D_H1 * D_OUT,
        transcendentals=0,
        bytes_accessed=(B_pad * D_IN * x_bytes        # x stream (dominant)
                        + D_IN * D_H1 * 2             # W1 (bf16)
                        + D_H1 * 4                    # b1
                        + D_H1 * D_OUT * 2            # folded Wc (bf16)
                        + D_OUT * 4                   # folded bc
                        + B_pad * D_OUT * 4),         # output
    )

    out = pl.pallas_call(
        _mlp_kernel,
        out_shape=jax.ShapeDtypeStruct((B_pad, D_OUT), jnp.float32),
        grid_spec=pltpu.PrefetchScalarGridSpec(
            num_scalar_prefetch=0,
            grid=(B_pad // TB,),
            in_specs=[
                pl.BlockSpec((TB, D_IN), lambda i: (i, 0)),   # batch-tiled x
                _resident_spec((D_IN, D_H1)),                 # W1
                _resident_spec((1, D_H1)),                    # b1
                _resident_spec((D_H1, D_OUT)),                # folded Wc
                _resident_spec((1, D_OUT)),                   # folded bc
            ],
            out_specs=pl.BlockSpec((TB, D_OUT), lambda i: (i, 0)),
        ),
        compiler_params=pltpu.CompilerParams(
            # Independent batch tiles -> shard across v7x's 2 TensorCores.
            dimension_semantics=("parallel",),
        ),
        cost_estimate=cost,
    )(x, w1, b1, wc, bc)
    return out[:B]


def init_raw_params(key):
    """fp32 params mimicking torch.nn.Linear init U(-1/sqrt(fan_in), +1/sqrt(fan_in)).
    Weights stored transposed vs. PyTorch, i.e. (in_features, out_features)."""
    dims = [(D_IN, D_H1), (D_H1, D_H3), (D_H3, D_H4), (D_H4, D_OUT)]
    keys = jax.random.split(key, 2 * len(dims))
    params = []
    for i, (fin, fout) in enumerate(dims):
        bound = 1.0 / math.sqrt(fin)
        w = jax.random.uniform(keys[2 * i], (fin, fout), jnp.float32, -bound, bound)
        b = jax.random.uniform(keys[2 * i + 1], (1, fout), jnp.float32, -bound, bound)
        params += [w, b]
    return tuple(params)


def fold_params(raw):
    """Fold fc3/fc4/fc5 into one linear layer (exact, fp32), cast weights to bf16."""
    w1, b1, w3, b3, w4, b4, w5, b5 = raw
    wc = (w3 @ w4) @ w5                    # (450, 2)
    bc = ((b3 @ w4) + b4) @ w5 + b5        # (1, 2)
    return (w1.astype(jnp.bfloat16), b1, wc.astype(jnp.bfloat16), bc)


def reference_forward(x, raw):
    """fp32 reference matching the original PyTorch forward exactly."""
    w1, b1, w3, b3, w4, b4, w5, b5 = raw
    h1 = jnp.maximum(x @ w1 + b1, 0.0)
    return ((h1 @ w3 + b3) @ w4 + b4) @ w5 + b5


if __name__ == "__main__":
    key = jax.random.PRNGKey(0)
    k_x, k_p = jax.random.split(key)

    raw = init_raw_params(k_p)
    params = fold_params(raw)

    # Small batch (typical single-request inference).  Producer emits bf16 x.
    B = 8
    x32 = jax.random.normal(k_x, (B, D_IN), jnp.float32)
    x = x32.astype(jnp.bfloat16)
    out = jax.block_until_ready(net_forward(x, params))
    ref = reference_forward(x.astype(jnp.float32), raw)
    assert out.shape == (B, D_OUT)
    assert jnp.allclose(out, ref, atol=3e-2, rtol=3e-2), "mismatch (bf16 x, B=8)"

    # fp32 input path (in-kernel cast, no wrapper-side cast) still works.
    out32 = jax.block_until_ready(net_forward(x32, params))
    ref32 = reference_forward(x32, raw)
    assert jnp.allclose(out32, ref32, atol=3e-2, rtol=3e-2), "mismatch (fp32 x)"

    # Larger non-multiple-of-tile batch: exercises padding and >= 2 grid steps
    # (v7x megacore split) under the default 1024 tile cap.
    B2 = 300
    x2 = jax.random.normal(k_x, (B2, D_IN), jnp.float32).astype(jnp.bfloat16)
    out2 = jax.block_until_ready(net_forward(x2, params))
    ref2 = reference_forward(x2.astype(jnp.float32), raw)
    assert out2.shape == (B2, D_OUT)
    assert jnp.allclose(out2, ref2, atol=3e-2, rtol=3e-2), "mismatch (bf16 x, tiled)"

    print("KERNEL_OK")
</pallas_src>

<mosaic_0001>
module attributes {stable_mosaic.version = 11 : i64} {
  func.func @_mlp_kernel(%arg0: i32, %arg1: memref<8x799xbf16, #tpu.memory_space<vmem>>, %arg2: memref<799x450xbf16, #tpu.memory_space<vmem>>, %arg3: memref<1x450xf32, #tpu.memory_space<vmem>>, %arg4: memref<450x2xbf16, #tpu.memory_space<vmem>>, %arg5: memref<1x2xf32, #tpu.memory_space<vmem>>, %arg6: memref<8x2xf32, #tpu.memory_space<vmem>>) attributes {dimension_semantics = [#tpu.dimension_semantics<parallel>], iteration_bounds = array<i64: 1>, scalar_prefetch = 0 : i64, scratch_operands = 0 : i64, tpu.core_type = #tpu.core_type<tc>, window_params = [{transform_indices = @transform_0, window_bounds = array<i64: 8, 799>}, {pipeline_mode = #tpu.pipeline_mode<synchronous>, transform_indices = @transform_1, window_bounds = array<i64: 799, 450>}, {pipeline_mode = #tpu.pipeline_mode<synchronous>, transform_indices = @transform_2, window_bounds = array<i64: 1, 450>}, {pipeline_mode = #tpu.pipeline_mode<synchronous>, transform_indices = @transform_3, window_bounds = array<i64: 450, 2>}, {pipeline_mode = #tpu.pipeline_mode<synchronous>, transform_indices = @transform_4, window_bounds = array<i64: 1, 2>}, {transform_indices = @transform_5, window_bounds = array<i64: 8, 2>}]} {
    %c0 = arith.constant 0 : index
    %c0_0 = arith.constant 0 : index
    %0 = vector.load %arg1[%c0, %c0_0] : memref<8x799xbf16, #tpu.memory_space<vmem>>, vector<8x799xbf16>
    %c0_1 = arith.constant 0 : index
    %c0_2 = arith.constant 0 : index
    %1 = vector.load %arg2[%c0_1, %c0_2] : memref<799x450xbf16, #tpu.memory_space<vmem>>, vector<799x450xbf16>
    %cst = arith.constant dense<0.000000e+00> : vector<8x450xf32>
    %2 = tpu.matmul %0, %1, %cst {dimension_numbers = #tpu.dot_dimension_numbers<[1], [0], [0], [1], [0, 0, 1, 1], [], []>} : vector<8x799xbf16>, vector<799x450xbf16>, vector<8x450xf32> -> vector<8x450xf32>
    %c0_3 = arith.constant 0 : index
    %c0_4 = arith.constant 0 : index
    %3 = vector.load %arg3[%c0_3, %c0_4] : memref<1x450xf32, #tpu.memory_space<vmem>>, vector<1x450xf32>
    %4 = vector.broadcast %3 : vector<1x450xf32> to vector<8x450xf32>
    %5 = arith.addf %2, %4 : vector<8x450xf32>
    %cst_5 = arith.constant 0.000000e+00 : f32
    %6 = vector.broadcast %cst_5 : f32 to vector<8x450xf32>
    %7 = arith.maximumf %5, %6 : vector<8x450xf32>
    %8 = arith.truncf %7 : vector<8x450xf32> to vector<8x450xbf16>
    %c0_6 = arith.constant 0 : index
    %c0_7 = arith.constant 0 : index
    %9 = vector.load %arg4[%c0_6, %c0_7] : memref<450x2xbf16, #tpu.memory_space<vmem>>, vector<450x2xbf16>
    %cst_8 = arith.constant dense<0.000000e+00> : vector<8x2xf32>
    %10 = tpu.matmul %8, %9, %cst_8 {dimension_numbers = #tpu.dot_dimension_numbers<[1], [0], [0], [1], [0, 0, 1, 1], [], []>} : vector<8x450xbf16>, vector<450x2xbf16>, vector<8x2xf32> -> vector<8x2xf32>
    %c0_9 = arith.constant 0 : index
    %c0_10 = arith.constant 0 : index
    %11 = vector.load %arg5[%c0_9, %c0_10] : memref<1x2xf32, #tpu.memory_space<vmem>>, vector<1x2xf32>
    %12 = vector.broadcast %11 : vector<1x2xf32> to vector<8x2xf32>
    %13 = arith.addf %10, %12 : vector<8x2xf32>
    %c0_11 = arith.constant 0 : index
    %c0_12 = arith.constant 0 : index
    %14 = vector.load %arg6[%c0_11, %c0_12] : memref<8x2xf32, #tpu.memory_space<vmem>>, vector<8x2xf32>
    tpu.vector_store %arg6[%c0_11, %c0_12], %13 {strides = array<i32>} : memref<8x2xf32, #tpu.memory_space<vmem>>, vector<8x2xf32>,
    return
  }
  func.func @transform_0(%arg0: i32) -> (i32, i32) {
    %c0_i32 = arith.constant 0 : i32
    %c0_i32_0 = arith.constant 0 : i32
    return %arg0, %c0_i32 : i32, i32
  }
  func.func @transform_1(%arg0: i32) -> (i32, i32) {
    %c0_i32 = arith.constant 0 : i32
    %c0_i32_0 = arith.constant 0 : i32
    %c0_i32_1 = arith.constant 0 : i32
    return %c0_i32, %c0_i32_0 : i32, i32
  }
  func.func @transform_2(%arg0: i32) -> (i32, i32) {
    %c0_i32 = arith.constant 0 : i32
    %c0_i32_0 = arith.constant 0 : i32
    %c0_i32_1 = arith.constant 0 : i32
    return %c0_i32, %c0_i32_0 : i32, i32
  }
  func.func @transform_3(%arg0: i32) -> (i32, i32) {
    %c0_i32 = arith.constant 0 : i32
    %c0_i32_0 = arith.constant 0 : i32
    %c0_i32_1 = arith.constant 0 : i32
    return %c0_i32, %c0_i32_0 : i32, i32
  }
  func.func @transform_4(%arg0: i32) -> (i32, i32) {
    %c0_i32 = arith.constant 0 : i32
    %c0_i32_0 = arith.constant 0 : i32
    %c0_i32_1 = arith.constant 0 : i32
    return %c0_i32, %c0_i32_0 : i32, i32
  }
  func.func @transform_5(%arg0: i32) -> (i32, i32) {
    %c0_i32 = arith.constant 0 : i32
    %c0_i32_0 = arith.constant 0 : i32
    return %arg0, %c0_i32 : i32, i32
  }
}

</mosaic_0001>

<llo_original>
// kernel: net_forward.1
$region0: #{net_forward.1}
  #allocation0 [shape = 'u32[]', space=smem, size = 0x4, offset = 0x4, fixed_abs, tag = 'smem constant byte address 0x4 - core index']
  #allocation1 [shape = 'u32[144,128]{1,0:T(1,128)}', space=vmem, size = 0x12000, scoped, tag = 'internal scratch']
  %s0 = inlined_call_operand.vmem [shape: bf16[8,799], index: 0, kind: input, shape index: {}]
  %s1 = inlined_call_operand.vmem [shape: bf16[799,450], index: 1, kind: input, shape index: {}]
  %s2 = inlined_call_operand.vmem [shape: f32[1,450], index: 2, kind: input, shape index: {}]
  %s3 = inlined_call_operand.vmem [shape: bf16[450,2], index: 3, kind: input, shape index: {}]
  %s4 = inlined_call_operand.vmem [shape: f32[1,2], index: 4, kind: input, shape index: {}]
  %s5 = inlined_call_operand.vmem [shape: f32[8,2], index: 5, kind: output, shape index: {}]
  %s6 = sld [smem:[#allocation0]]
  $region30: #{net_forward.1} parent=0
    _
  %s8 = ssub.s32 1, %s6
  %s9 = scalar_select 0, %s8, %s6
  // Predicated region
  $region2: #{net_forward.1} parent=0 // pred_check
    _
  $region3: #{net_forward.1} parent=0 // pred_check_branch
    %11 = sbr.rel (0) target = $region5
  $region4: #{net_forward.1} parent=0 // pred_region
    _
  $region5: #{net_forward.1} parent=0 // pred_fallthru
    _
  // Predicated region
  $region6: #{net_forward.1} parent=0 // pred_check
    _
  $region7: #{net_forward.1} parent=0 // pred_check_branch
    %13 = sbr.rel (0) target = $region9
  $region8: #{net_forward.1} parent=0 // pred_region
    _
  $region9: #{net_forward.1} parent=0 // pred_fallthru
    _
  // Predicated region
  $region10: #{net_forward.1} parent=0 // pred_check
    _
  $region11: #{net_forward.1} parent=0 // pred_check_branch
    %15 = sbr.rel (0) target = $region13
  $region12: #{net_forward.1} parent=0 // pred_region
    _
  $region13: #{net_forward.1} parent=0 // pred_fallthru
    _
  // Predicated region
  $region14: #{net_forward.1} parent=0 // pred_check
    _
  $region15: #{net_forward.1} parent=0 // pred_check_branch
    %17 = sbr.rel (0) target = $region17
  $region16: #{net_forward.1} parent=0 // pred_region
    _
  $region17: #{net_forward.1} parent=0 // pred_fallthru
    _
  // Predicated region
  $region18: #{net_forward.1} parent=0 // pred_check
    _
  $region19: #{net_forward.1} parent=0 // pred_check_branch
    %19 = sbr.rel (0) target = $region21
  $region20: #{net_forward.1} parent=0 // pred_region
    _
  $region21: #{net_forward.1} parent=0 // pred_fallthru
    _
  %v21 = vld [vmem:[%s0] sm:$0xff]
  %v22 = vld [vmem:[%s0 + $0x8] sm:$0xff]
  %v23 = vld [vmem:[%s0 + $0x10] sm:$0xff]
  %v24 = vld [vmem:[%s0 + $0x18] sm:$0xf]
  %v25 = vld [vmem:[%s1] sm:$0xff]
  %v26 = vld [vmem:[%s1 + $0x8] sm:$0xff]
  %v27 = vld [vmem:[%s1 + $0x10] sm:$0xff]
  %v28 = vld [vmem:[%s1 + $0x18] sm:$0xff]
  %v29 = vld [vmem:[%s1 + $0x20] sm:$0xff]
  %v30 = vld [vmem:[%s1 + $0x28] sm:$0xff]
  %v31 = vld [vmem:[%s1 + $0x30] sm:$0xff]
  %v32 = vld [vmem:[%s1 + $0x38] sm:$0xff]
  %v33 = vld [vmem:[%s1 + $0x40] sm:$0xff]
  %v34 = vld [vmem:[%s1 + $0x48] sm:$0xff]
  %v35 = vld [vmem:[%s1 + $0x50] sm:$0xff]
  %v36 = vld [vmem:[%s1 + $0x58] sm:$0xff]
  %v37 = vld [vmem:[%s1 + $0x60] sm:$0xff]
  %v38 = vld [vmem:[%s1 + $0x68] sm:$0xff]
  %v39 = vld [vmem:[%s1 + $0x70] sm:$0xff]
  %v40 = vld [vmem:[%s1 + $0x78] sm:$0xff]
  %v41 = vld [vmem:[%s1 + $0x80] sm:$0xff]
  %v42 = vld [vmem:[%s1 + $0x88] sm:$0xff]
  %v43 = vld [vmem:[%s1 + $0x90] sm:$0xff]
  %v44 = vld [vmem:[%s1 + $0x98] sm:$0xff]
  %v45 = vld [vmem:[%s1 + $0xa0] sm:$0xff]
  %v46 = vld [vmem:[%s1 + $0xa8] sm:$0xff]
  %v47 = vld [vmem:[%s1 + $0xb0] sm:$0xff]
  %v48 = vld [vmem:[%s1 + $0xb8] sm:$0xff]
  %v49 = vld [vmem:[%s1 + $0xc0] sm:$0xff]
  %v50 = vld [vmem:[%s1 + $0xc8] sm:$0xff]
  %v51 = vld [vmem:[%s1 + $0xd0] sm:$0xff]
  %v52 = vld [vmem:[%s1 + $0xd8] sm:$0xff]
  %v53 = vld [vmem:[%s1 + $0xe0] sm:$0xff]
  %v54 = vld [vmem:[%s1 + $0xe8] sm:$0xff]
  %v55 = vld [vmem:[%s1 + $0xf0] sm:$0xff]
  %v56 = vld [vmem:[%s1 + $0xf8] sm:$0xff]
  %v57 = vld [vmem:[%s1 + $0x100] sm:$0xff]
  %v58 = vld [vmem:[%s1 + $0x108] sm:$0xff]
  %v59 = vld [vmem:[%s1 + $0x110] sm:$0xff]
  %v60 = vld [vmem:[%s1 + $0x118] sm:$0xff]
  %v61 = vld [vmem:[%s1 + $0x120] sm:$0xff]
  %v62 = vld [vmem:[%s1 + $0x128] sm:$0xff]
  %v63 = vld [vmem:[%s1 + $0x130] sm:$0xff]
  %v64 = vld [vmem:[%s1 + $0x138] sm:$0xff]
  %v65 = vld [vmem:[%s1 + $0x140] sm:$0xff]
  %v66 = vld [vmem:[%s1 + $0x148] sm:$0xff]
  %v67 = vld [vmem:[%s1 + $0x150] sm:$0xff]
  %v68 = vld [vmem:[%s1 + $0x158] sm:$0xff]
  %v69 = vld [vmem:[%s1 + $0x160] sm:$0xff]
  %v70 = vld [vmem:[%s1 + $0x168] sm:$0xff]
  %v71 = vld [vmem:[%s1 + $0x170] sm:$0xff]
  %v72 = vld [vmem:[%s1 + $0x178] sm:$0xff]
  %v73 = vld [vmem:[%s1 + $0x180] sm:$0xff]
  %v74 = vld [vmem:[%s1 + $0x188] sm:$0xff]
  %v75 = vld [vmem:[%s1 + $0x190] sm:$0xff]
  %v76 = vld [vmem:[%s1 + $0x198] sm:$0xff]
  %v77 = vld [vmem:[%s1 + $0x1a0] sm:$0xff]
  %v78 = vld [vmem:[%s1 + $0x1a8] sm:$0xff]
  %v79 = vld [vmem:[%s1 + $0x1b0] sm:$0xff]
  %v80 = vld [vmem:[%s1 + $0x1b8] sm:$0xff]
  %v81 = vld [vmem:[%s1 + $0x1c0] sm:$0xff]
  %v82 = vld [vmem:[%s1 + $0x1c8] sm:$0xff]
  %v83 = vld [vmem:[%s1 + $0x1d0] sm:$0xff]
  %v84 = vld [vmem:[%s1 + $0x1d8] sm:$0xff]
  %v85 = vld [vmem:[%s1 + $0x1e0] sm:$0xff]
  %v86 = vld [vmem:[%s1 + $0x1e8] sm:$0xff]
  %v87 = vld [vmem:[%s1 + $0x1f0] sm:$0xff]
  %v88 = vld [vmem:[%s1 + $0x1f8] sm:$0xff]
  %v89 = vld [vmem:[%s1 + $0x200] sm:$0xff]
  %v90 = vld [vmem:[%s1 + $0x208] sm:$0xff]
  %v91 = vld [vmem:[%s1 + $0x210] sm:$0xff]
  %v92 = vld [vmem:[%s1 + $0x218] sm:$0xff]
  %v93 = vld [vmem:[%s1 + $0x220] sm:$0xff]
  %v94 = vld [vmem:[%s1 + $0x228] sm:$0xff]
  %v95 = vld [vmem:[%s1 + $0x230] sm:$0xff]
  %v96 = vld [vmem:[%s1 + $0x238] sm:$0xff]
  %v97 = vld [vmem:[%s1 + $0x240] sm:$0xff]
  %v98 = vld [vmem:[%s1 + $0x248] sm:$0xff]
  %v99 = vld [vmem:[%s1 + $0x250] sm:$0xff]
  %v100 = vld [vmem:[%s1 + $0x258] sm:$0xff]
  %v101 = vld [vmem:[%s1 + $0x260] sm:$0xff]
  %v102 = vld [vmem:[%s1 + $0x268] sm:$0xff]
  %v103 = vld [vmem:[%s1 + $0x270] sm:$0xff]
  %v104 = vld [vmem:[%s1 + $0x278] sm:$0xff]
  %v105 = vld [vmem:[%s1 + $0x280] sm:$0xff]
  %v106 = vld [vmem:[%s1 + $0x288] sm:$0xff]
  %v107 = vld [vmem:[%s1 + $0x290] sm:$0xff]
  %v108 = vld [vmem:[%s1 + $0x298] sm:$0xff]
  %v109 = vld [vmem:[%s1 + $0x2a0] sm:$0xff]
  %v110 = vld [vmem:[%s1 + $0x2a8] sm:$0xff]
  %v111 = vld [vmem:[%s1 + $0x2b0] sm:$0xff]
  %v112 = vld [vmem:[%s1 + $0x2b8] sm:$0xff]
  %v113 = vld [vmem:[%s1 + $0x2c0] sm:$0xff]
  %v114 = vld [vmem:[%s1 + $0x2c8] sm:$0xff]
  %v115 = vld [vmem:[%s1 + $0x2d0] sm:$0xff]
  %v116 = vld [vmem:[%s1 + $0x2d8] sm:$0xff]
  %v117 = vld [vmem:[%s1 + $0x2e0] sm:$0xff]
  %v118 = vld [vmem:[%s1 + $0x2e8] sm:$0xff]
  %v119 = vld [vmem:[%s1 + $0x2f0] sm:$0xff]
  %v120 = vld [vmem:[%s1 + $0x2f8] sm:$0xff]
  %v121 = vld [vmem:[%s1 + $0x300] sm:$0xff]
  %v122 = vld [vmem:[%s1 + $0x308] sm:$0xff]
  %v123 = vld [vmem:[%s1 + $0x310] sm:$0xff]
  %v124 = vld [vmem:[%s1 + $0x318] sm:$0xff]
  %v125 = vld [vmem:[%s1 + $0x320] sm:$0xff]
  %v126 = vld [vmem:[%s1 + $0x328] sm:$0xff]
  %v127 = vld [vmem:[%s1 + $0x330] sm:$0xff]
  %v128 = vld [vmem:[%s1 + $0x338] sm:$0xff]
  %v129 = vld [vmem:[%s1 + $0x340] sm:$0xff]
  %v130 = vld [vmem:[%s1 + $0x348] sm:$0xff]
  %v131 = vld [vmem:[%s1 + $0x350] sm:$0xff]
  %v132 = vld [vmem:[%s1 + $0x358] sm:$0xff]
  %v133 = vld [vmem:[%s1 + $0x360] sm:$0xff]
  %v134 = vld [vmem:[%s1 + $0x368] sm:$0xff]
  %v135 = vld [vmem:[%s1 + $0x370] sm:$0xff]
  %v136 = vld [vmem:[%s1 + $0x378] sm:$0xff]
  %v137 = vld [vmem:[%s1 + $0x380] sm:$0xff]
  %v138 = vld [vmem:[%s1 + $0x388] sm:$0xff]
  %v139 = vld [vmem:[%s1 + $0x390] sm:$0xff]
  %v140 = vld [vmem:[%s1 + $0x398] sm:$0xff]
  %v141 = vld [vmem:[%s1 + $0x3a0] sm:$0xff]
  %v142 = vld [vmem:[%s1 + $0x3a8] sm:$0xff]
  %v143 = vld [vmem:[%s1 + $0x3b0] sm:$0xff]
  %v144 = vld [vmem:[%s1 + $0x3b8] sm:$0xff]
  %v145 = vld [vmem:[%s1 + $0x3c0] sm:$0xff]
  %v146 = vld [vmem:[%s1 + $0x3c8] sm:$0xff]
  %v147 = vld [vmem:[%s1 + $0x3d0] sm:$0xff]
  %v148 = vld [vmem:[%s1 + $0x3d8] sm:$0xff]
  %v149 = vld [vmem:[%s1 + $0x3e0] sm:$0xff]
  %v150 = vld [vmem:[%s1 + $0x3e8] sm:$0xff]
  %v151 = vld [vmem:[%s1 + $0x3f0] sm:$0xff]
  %v152 = vld [vmem:[%s1 + $0x3f8] sm:$0xff]
  %v153 = vld [vmem:[%s1 + $0x400] sm:$0xff]
  %v154 = vld [vmem:[%s1 + $0x408] sm:$0xff]
  %v155 = vld [vmem:[%s1 + $0x410] sm:$0xff]
  %v156 = vld [vmem:[%s1 + $0x418] sm:$0xff]
  %v157 = vld [vmem:[%s1 + $0x420] sm:$0xff]
  %v158 = vld [vmem:[%s1 + $0x428] sm:$0xff]
  %v159 = vld [vmem:[%s1 + $0x430] sm:$0xff]
  %v160 = vld [vmem:[%s1 + $0x438] sm:$0xff]
  %v161 = vld [vmem:[%s1 + $0x440] sm:$0xff]
  %v162 = vld [vmem:[%s1 + $0x448] sm:$0xff]
  %v163 = vld [vmem:[%s1 + $0x450] sm:$0xff]
  %v164 = vld [vmem:[%s1 + $0x458] sm:$0xff]
  %v165 = vld [vmem:[%s1 + $0x460] sm:$0xff]
  %v166 = vld [vmem:[%s1 + $0x468] sm:$0xff]
  %v167 = vld [vmem:[%s1 + $0x470] sm:$0xff]
  %v168 = vld [vmem:[%s1 + $0x478] sm:$0xff]
  %v169 = vld [vmem:[%s1 + $0x480] sm:$0xff]
  %v170 = vld [vmem:[%s1 + $0x488] sm:$0xff]
  %v171 = vld [vmem:[%s1 + $0x490] sm:$0xff]
  %v172 = vld [vmem:[%s1 + $0x498] sm:$0xff]
  %v173 = vld [vmem:[%s1 + $0x4a0] sm:$0xff]
  %v174 = vld [vmem:[%s1 + $0x4a8] sm:$0xff]
  %v175 = vld [vmem:[%s1 + $0x4b0] sm:$0xff]
  %v176 = vld [vmem:[%s1 + $0x4b8] sm:$0xff]
  %v177 = vld [vmem:[%s1 + $0x4c0] sm:$0xff]
  %v178 = vld [vmem:[%s1 + $0x4c8] sm:$0xff]
  %v179 = vld [vmem:[%s1 + $0x4d0] sm:$0xff]
  %v180 = vld [vmem:[%s1 + $0x4d8] sm:$0xff]
  %v181 = vld [vmem:[%s1 + $0x4e0] sm:$0xff]
  %v182 = vld [vmem:[%s1 + $0x4e8] sm:$0xff]
  %v183 = vld [vmem:[%s1 + $0x4f0] sm:$0xff]
  %v184 = vld [vmem:[%s1 + $0x4f8] sm:$0xff]
  %v185 = vld [vmem:[%s1 + $0x500] sm:$0xff]
  %v186 = vld [vmem:[%s1 + $0x508] sm:$0xff]
  %v187 = vld [vmem:[%s1 + $0x510] sm:$0xff]
  %v188 = vld [vmem:[%s1 + $0x518] sm:$0xff]
  %v189 = vld [vmem:[%s1 + $0x520] sm:$0xff]
  %v190 = vld [vmem:[%s1 + $0x528] sm:$0xff]
  %v191 = vld [vmem:[%s1 + $0x530] sm:$0xff]
  %v192 = vld [vmem:[%s1 + $0x538] sm:$0xff]
  %v193 = vld [vmem:[%s1 + $0x540] sm:$0xff]
  %v194 = vld [vmem:[%s1 + $0x548] sm:$0xff]
  %v195 = vld [vmem:[%s1 + $0x550] sm:$0xff]
  %v196 = vld [vmem:[%s1 + $0x558] sm:$0xff]
  %v197 = vld [vmem:[%s1 + $0x560] sm:$0xff]
  %v198 = vld [vmem:[%s1 + $0x568] sm:$0xff]
  %v199 = vld [vmem:[%s1 + $0x570] sm:$0xff]
  %v200 = vld [vmem:[%s1 + $0x578] sm:$0xff]
  %v201 = vld [vmem:[%s1 + $0x580] sm:$0xff]
  %v202 = vld [vmem:[%s1 + $0x588] sm:$0xff]
  %v203 = vld [vmem:[%s1 + $0x590] sm:$0xff]
  %v204 = vld [vmem:[%s1 + $0x598] sm:$0xff]
  %v205 = vld [vmem:[%s1 + $0x5a0] sm:$0xff]
  %v206 = vld [vmem:[%s1 + $0x5a8] sm:$0xff]
  %v207 = vld [vmem:[%s1 + $0x5b0] sm:$0xff]
  %v208 = vld [vmem:[%s1 + $0x5b8] sm:$0xff]
  %v209 = vld [vmem:[%s1 + $0x5c0] sm:$0xff]
  %v210 = vld [vmem:[%s1 + $0x5c8] sm:$0xff]
  %v211 = vld [vmem:[%s1 + $0x5d0] sm:$0xff]
  %v212 = vld [vmem:[%s1 + $0x5d8] sm:$0xff]
  %v213 = vld [vmem:[%s1 + $0x5e0] sm:$0xff]
  %v214 = vld [vmem:[%s1 + $0x5e8] sm:$0xff]
  %v215 = vld [vmem:[%s1 + $0x5f0] sm:$0xff]
  %v216 = vld [vmem:[%s1 + $0x5f8] sm:$0xff]
  %v217 = vld [vmem:[%s1 + $0x600] sm:$0xff]
  %v218 = vld [vmem:[%s1 + $0x608] sm:$0xff]
  %v219 = vld [vmem:[%s1 + $0x610] sm:$0xff]
  %v220 = vld [vmem:[%s1 + $0x618] sm:$0xff]
  %v221 = vld [vmem:[%s1 + $0x620] sm:$0xff]
  %v222 = vld [vmem:[%s1 + $0x628] sm:$0xff]
  %v223 = vld [vmem:[%s1 + $0x630] sm:$0xff]
  %v224 = vld [vmem:[%s1 + $0x638] sm:$0xff]
  %v225 = vld [vmem:[%s2] sm:$0xf]
  %v227 = vlaneseq
  %v228 = vshrl.u32 %v227, 7
  %v229 = vsub.s32 0, %v228
  %v230 = vrot.slane %v225, %v229
  %v231 = vlaneseq
  %v232 = vshrl.u32 %v231, 7
  %v233 = vsub.s32 1, %v232
  %v234 = vrot.slane %v225, %v233
  %v235 = vlaneseq
  %v236 = vshrl.u32 %v235, 7
  %v237 = vsub.s32 2, %v236
  %v238 = vrot.slane %v225, %v237
  %v239 = vlaneseq
  %v240 = vshrl.u32 %v239, 7
  %v241 = vsub.s32 3, %v240
  %v242 = vrot.slane %v225, %v241
  %v251 = vunpack.c.l.b16 %v21
  %v252 = vunpack.c.h.b16 %v21
  %v253 = vunpack.c.l.b16 %v22
  %v254 = vunpack.c.h.b16 %v22
  %v255 = vunpack.c.l.b16 %v23
  %v256 = vunpack.c.h.b16 %v23
  %v257 = vunpack.c.l.b16 %v24
  %v258 = vpack.c.b16 %v251, %v251
  %v259 = vpack.c.b16 %v252, %v252
  %v260 = vpack.c.b16 %v253, %v253
  %v261 = vpack.c.b16 %v254, %v254
  %v262 = vpack.c.b16 %v255, %v255
  %v263 = vpack.c.b16 %v256, %v256
  %v264 = vpack.c.b16 %v257, %v257
  %v471 = vunpack.c.l.b16 %v25
  %v472 = vunpack.c.h.b16 %v25
  %v473 = vunpack.c.l.b16 %v26
  %v474 = vunpack.c.h.b16 %v26
  %v475 = vunpack.c.l.b16 %v27
  %v476 = vunpack.c.h.b16 %v27
  %v477 = vunpack.c.l.b16 %v28
  %v478 = vunpack.c.h.b16 %v28
  %v479 = vunpack.c.l.b16 %v29
  %v480 = vunpack.c.h.b16 %v29
  %v481 = vunpack.c.l.b16 %v30
  %v482 = vunpack.c.h.b16 %v30
  %v483 = vunpack.c.l.b16 %v31
  %v484 = vunpack.c.h.b16 %v31
  %v485 = vunpack.c.l.b16 %v32
  %v486 = vunpack.c.h.b16 %v32
  %v487 = vunpack.c.l.b16 %v33
  %v488 = vunpack.c.h.b16 %v33
  %v489 = vunpack.c.l.b16 %v34
  %v490 = vunpack.c.h.b16 %v34
  %v491 = vunpack.c.l.b16 %v35
  %v492 = vunpack.c.h.b16 %v35
  %v493 = vunpack.c.l.b16 %v36
  %v494 = vunpack.c.h.b16 %v36
  %v495 = vunpack.c.l.b16 %v37
  %v496 = vunpack.c.h.b16 %v37
  %v497 = vunpack.c.l.b16 %v38
  %v498 = vunpack.c.h.b16 %v38
  %v499 = vunpack.c.l.b16 %v39
  %v500 = vunpack.c.h.b16 %v39
  %v501 = vunpack.c.l.b16 %v40
  %v502 = vunpack.c.h.b16 %v40
  %v503 = vunpack.c.l.b16 %v41
  %v504 = vunpack.c.h.b16 %v41
  %v505 = vunpack.c.l.b16 %v42
  %v506 = vunpack.c.h.b16 %v42
  %v507 = vunpack.c.l.b16 %v43
  %v508 = vunpack.c.h.b16 %v43
  %v509 = vunpack.c.l.b16 %v44
  %v510 = vunpack.c.h.b16 %v44
  %v511 = vunpack.c.l.b16 %v45
  %v512 = vunpack.c.h.b16 %v45
  %v513 = vunpack.c.l.b16 %v46
  %v514 = vunpack.c.h.b16 %v46
  %v515 = vunpack.c.l.b16 %v47
  %v516 = vunpack.c.h.b16 %v47
  %v517 = vunpack.c.l.b16 %v48
  %v518 = vunpack.c.h.b16 %v48
  %v519 = vunpack.c.l.b16 %v49
  %v520 = vunpack.c.h.b16 %v49
  %v521 = vunpack.c.l.b16 %v50
  %v522 = vunpack.c.h.b16 %v50
  %v523 = vunpack.c.l.b16 %v51
  %v524 = vunpack.c.h.b16 %v51
  %v525 = vunpack.c.l.b16 %v52
  %v526 = vunpack.c.h.b16 %v52
  %v527 = vunpack.c.l.b16 %v53
  %v528 = vunpack.c.h.b16 %v53
  %v529 = vunpack.c.l.b16 %v54
  %v530 = vunpack.c.h.b16 %v54
  %v531 = vunpack.c.l.b16 %v55
  %v532 = vunpack.c.h.b16 %v55
  %v533 = vunpack.c.l.b16 %v56
  %v534 = vunpack.c.h.b16 %v56
  %v535 = vunpack.c.l.b16 %v57
  %v536 = vunpack.c.h.b16 %v57
  %v537 = vunpack.c.l.b16 %v58
  %v538 = vunpack.c.h.b16 %v58
  %v539 = vunpack.c.l.b16 %v59
  %v540 = vunpack.c.h.b16 %v59
  %v541 = vunpack.c.l.b16 %v60
  %v542 = vunpack.c.h.b16 %v60
  %v543 = vunpack.c.l.b16 %v61
  %v544 = vunpack.c.h.b16 %v61
  %v545 = vunpack.c.l.b16 %v62
  %v546 = vunpack.c.h.b16 %v62
  %v547 = vunpack.c.l.b16 %v63
  %v548 = vunpack.c.h.b16 %v63
  %v549 = vunpack.c.l.b16 %v64
  %v550 = vunpack.c.h.b16 %v64
  %v551 = vunpack.c.l.b16 %v65
  %v552 = vunpack.c.h.b16 %v65
  %v553 = vunpack.c.l.b16 %v66
  %v554 = vunpack.c.h.b16 %v66
  %v555 = vunpack.c.l.b16 %v67
  %v556 = vunpack.c.h.b16 %v67
  %v557 = vunpack.c.l.b16 %v68
  %v558 = vunpack.c.h.b16 %v68
  %v559 = vunpack.c.l.b16 %v69
  %v560 = vunpack.c.h.b16 %v69
  %v561 = vunpack.c.l.b16 %v70
  %v562 = vunpack.c.h.b16 %v70
  %v563 = vunpack.c.l.b16 %v71
  %v564 = vunpack.c.h.b16 %v71
  %v565 = vunpack.c.l.b16 %v72
  %v566 = vunpack.c.h.b16 %v72
  %v567 = vunpack.c.l.b16 %v73
  %v568 = vunpack.c.h.b16 %v73
  %v569 = vunpack.c.l.b16 %v74
  %v570 = vunpack.c.h.b16 %v74
  %v571 = vunpack.c.l.b16 %v75
  %v572 = vunpack.c.h.b16 %v75
  %v573 = vunpack.c.l.b16 %v76
  %v574 = vunpack.c.h.b16 %v76
  %v575 = vunpack.c.l.b16 %v77
  %v576 = vunpack.c.h.b16 %v77
  %v577 = vunpack.c.l.b16 %v78
  %v578 = vunpack.c.h.b16 %v78
  %v579 = vunpack.c.l.b16 %v79
  %v580 = vunpack.c.h.b16 %v79
  %v581 = vunpack.c.l.b16 %v80
  %v582 = vunpack.c.h.b16 %v80
  %v583 = vunpack.c.l.b16 %v81
  %v584 = vunpack.c.h.b16 %v81
  %v585 = vunpack.c.l.b16 %v82
  %v586 = vunpack.c.h.b16 %v82
  %v587 = vunpack.c.l.b16 %v83
  %v588 = vunpack.c.h.b16 %v83
  %v589 = vunpack.c.l.b16 %v84
  %v590 = vunpack.c.h.b16 %v84
  %v591 = vunpack.c.l.b16 %v85
  %v592 = vunpack.c.h.b16 %v85
  %v593 = vunpack.c.l.b16 %v86
  %v594 = vunpack.c.h.b16 %v86
  %v595 = vunpack.c.l.b16 %v87
  %v596 = vunpack.c.h.b16 %v87
  %v597 = vunpack.c.l.b16 %v88
  %v598 = vunpack.c.h.b16 %v88
  %v599 = vunpack.c.l.b16 %v89
  %v600 = vunpack.c.h.b16 %v89
  %v601 = vunpack.c.l.b16 %v90
  %v602 = vunpack.c.h.b16 %v90
  %v603 = vunpack.c.l.b16 %v91
  %v604 = vunpack.c.h.b16 %v91
  %v605 = vunpack.c.l.b16 %v92
  %v606 = vunpack.c.h.b16 %v92
  %v607 = vunpack.c.l.b16 %v93
  %v608 = vunpack.c.h.b16 %v93
  %v609 = vunpack.c.l.b16 %v94
  %v610 = vunpack.c.h.b16 %v94
  %v611 = vunpack.c.l.b16 %v95
  %v612 = vunpack.c.h.b16 %v95
  %v613 = vunpack.c.l.b16 %v96
  %v614 = vunpack.c.h.b16 %v96
  %v615 = vunpack.c.l.b16 %v97
  %v616 = vunpack.c.h.b16 %v97
  %v617 = vunpack.c.l.b16 %v98
  %v618 = vunpack.c.h.b16 %v98
  %v619 = vunpack.c.l.b16 %v99
  %v620 = vunpack.c.h.b16 %v99
  %v621 = vunpack.c.l.b16 %v100
  %v622 = vunpack.c.h.b16 %v100
  %v623 = vunpack.c.l.b16 %v101
  %v624 = vunpack.c.h.b16 %v101
  %v625 = vunpack.c.l.b16 %v102
  %v626 = vunpack.c.h.b16 %v102
  %v627 = vunpack.c.l.b16 %v103
  %v628 = vunpack.c.h.b16 %v103
  %v629 = vunpack.c.l.b16 %v104
  %v630 = vunpack.c.h.b16 %v104
  %v631 = vunpack.c.l.b16 %v105
  %v632 = vunpack.c.h.b16 %v105
  %v633 = vunpack.c.l.b16 %v106
  %v634 = vunpack.c.h.b16 %v106
  %v635 = vunpack.c.l.b16 %v107
  %v636 = vunpack.c.h.b16 %v107
  %v637 = vunpack.c.l.b16 %v108
  %v638 = vunpack.c.h.b16 %v108
  %v639 = vunpack.c.l.b16 %v109
  %v640 = vunpack.c.h.b16 %v109
  %v641 = vunpack.c.l.b16 %v110
  %v642 = vunpack.c.h.b16 %v110
  %v643 = vunpack.c.l.b16 %v111
  %v644 = vunpack.c.h.b16 %v111
  %v645 = vunpack.c.l.b16 %v112
  %v646 = vunpack.c.h.b16 %v112
  %v647 = vunpack.c.l.b16 %v113
  %v648 = vunpack.c.h.b16 %v113
  %v649 = vunpack.c.l.b16 %v114
  %v650 = vunpack.c.h.b16 %v114
  %v651 = vunpack.c.l.b16 %v115
  %v652 = vunpack.c.h.b16 %v115
  %v653 = vunpack.c.l.b16 %v116
  %v654 = vunpack.c.h.b16 %v116
  %v655 = vunpack.c.l.b16 %v117
  %v656 = vunpack.c.h.b16 %v117
  %v657 = vunpack.c.l.b16 %v118
  %v658 = vunpack.c.h.b16 %v118
  %v659 = vunpack.c.l.b16 %v119
  %v660 = vunpack.c.h.b16 %v119
  %v661 = vunpack.c.l.b16 %v120
  %v662 = vunpack.c.h.b16 %v120
  %v663 = vunpack.c.l.b16 %v121
  %v664 = vunpack.c.h.b16 %v121
  %v665 = vunpack.c.l.b16 %v122
  %v666 = vunpack.c.h.b16 %v122
  %v667 = vunpack.c.l.b16 %v123
  %v668 = vunpack.c.h.b16 %v123
  %v669 = vunpack.c.l.b16 %v124
  %v670 = vunpack.c.h.b16 %v124
  %v671 = vunpack.c.l.b16 %v125
  %v672 = vunpack.c.h.b16 %v125
  %v673 = vunpack.c.l.b16 %v126
  %v674 = vunpack.c.h.b16 %v126
  %v675 = vunpack.c.l.b16 %v127
  %v676 = vunpack.c.h.b16 %v127
  %v677 = vunpack.c.l.b16 %v128
  %v678 = vunpack.c.h.b16 %v128
  %v679 = vunpack.c.l.b16 %v129
  %v680 = vunpack.c.h.b16 %v129
  %v681 = vunpack.c.l.b16 %v130
  %v682 = vunpack.c.h.b16 %v130
  %v683 = vunpack.c.l.b16 %v131
  %v684 = vunpack.c.h.b16 %v131
  %v685 = vunpack.c.l.b16 %v132
  %v686 = vunpack.c.h.b16 %v132
  %v687 = vunpack.c.l.b16 %v133
  %v688 = vunpack.c.h.b16 %v133
  %v689 = vunpack.c.l.b16 %v134
  %v690 = vunpack.c.h.b16 %v134
  %v691 = vunpack.c.l.b16 %v135
  %v692 = vunpack.c.h.b16 %v135
  %v693 = vunpack.c.l.b16 %v136
  %v694 = vunpack.c.h.b16 %v136
  %v695 = vunpack.c.l.b16 %v137
  %v696 = vunpack.c.h.b16 %v137
  %v697 = vunpack.c.l.b16 %v138
  %v698 = vunpack.c.h.b16 %v138
  %v699 = vunpack.c.l.b16 %v139
  %v700 = vunpack.c.h.b16 %v139
  %v701 = vunpack.c.l.b16 %v140
  %v702 = vunpack.c.h.b16 %v140
  %v703 = vunpack.c.l.b16 %v141
  %v704 = vunpack.c.h.b16 %v141
  %v705 = vunpack.c.l.b16 %v142
  %v706 = vunpack.c.h.b16 %v142
  %v707 = vunpack.c.l.b16 %v143
  %v708 = vunpack.c.h.b16 %v143
  %v709 = vunpack.c.l.b16 %v144
  %v710 = vunpack.c.h.b16 %v144
  %v711 = vunpack.c.l.b16 %v145
  %v712 = vunpack.c.h.b16 %v145
  %v713 = vunpack.c.l.b16 %v146
  %v714 = vunpack.c.h.b16 %v146
  %v715 = vunpack.c.l.b16 %v147
  %v716 = vunpack.c.h.b16 %v147
  %v717 = vunpack.c.l.b16 %v148
  %v718 = vunpack.c.h.b16 %v148
  %v719 = vunpack.c.l.b16 %v149
  %v720 = vunpack.c.h.b16 %v149
  %v721 = vunpack.c.l.b16 %v150
  %v722 = vunpack.c.h.b16 %v150
  %v723 = vunpack.c.l.b16 %v151
  %v724 = vunpack.c.h.b16 %v151
  %v725 = vunpack.c.l.b16 %v152
  %v726 = vunpack.c.h.b16 %v152
  %v727 = vunpack.c.l.b16 %v153
  %v728 = vunpack.c.h.b16 %v153
  %v729 = vunpack.c.l.b16 %v154
  %v730 = vunpack.c.h.b16 %v154
  %v731 = vunpack.c.l.b16 %v155
  %v732 = vunpack.c.h.b16 %v155
  %v733 = vunpack.c.l.b16 %v156
  %v734 = vunpack.c.h.b16 %v156
  %v735 = vunpack.c.l.b16 %v157
  %v736 = vunpack.c.h.b16 %v157
  %v737 = vunpack.c.l.b16 %v158
  %v738 = vunpack.c.h.b16 %v158
  %v739 = vunpack.c.l.b16 %v159
  %v740 = vunpack.c.h.b16 %v159
  %v741 = vunpack.c.l.b16 %v160
  %v742 = vunpack.c.h.b16 %v160
  %v743 = vunpack.c.l.b16 %v161
  %v744 = vunpack.c.h.b16 %v161
  %v745 = vunpack.c.l.b16 %v162
  %v746 = vunpack.c.h.b16 %v162
  %v747 = vunpack.c.l.b16 %v163
  %v748 = vunpack.c.h.b16 %v163
  %v749 = vunpack.c.l.b16 %v164
  %v750 = vunpack.c.h.b16 %v164
  %v751 = vunpack.c.l.b16 %v165
  %v752 = vunpack.c.h.b16 %v165
  %v753 = vunpack.c.l.b16 %v166
  %v754 = vunpack.c.h.b16 %v166
  %v755 = vunpack.c.l.b16 %v167
  %v756 = vunpack.c.h.b16 %v167
  %v757 = vunpack.c.l.b16 %v168
  %v758 = vunpack.c.h.b16 %v168
  %v759 = vunpack.c.l.b16 %v169
  %v760 = vunpack.c.h.b16 %v169
  %v761 = vunpack.c.l.b16 %v170
  %v762 = vunpack.c.h.b16 %v170
  %v763 = vunpack.c.l.b16 %v171
  %v764 = vunpack.c.h.b16 %v171
  %v765 = vunpack.c.l.b16 %v172
  %v766 = vunpack.c.h.b16 %v172
  %v767 = vunpack.c.l.b16 %v173
  %v768 = vunpack.c.h.b16 %v173
  %v769 = vunpack.c.l.b16 %v174
  %v770 = vunpack.c.h.b16 %v174
  %v771 = vunpack.c.l.b16 %v175
  %v772 = vunpack.c.h.b16 %v175
  %v773 = vunpack.c.l.b16 %v176
  %v774 = vunpack.c.h.b16 %v176
  %v775 = vunpack.c.l.b16 %v177
  %v776 = vunpack.c.h.b16 %v177
  %v777 = vunpack.c.l.b16 %v178
  %v778 = vunpack.c.h.b16 %v178
  %v779 = vunpack.c.l.b16 %v179
  %v780 = vunpack.c.h.b16 %v179
  %v781 = vunpack.c.l.b16 %v180
  %v782 = vunpack.c.h.b16 %v180
  %v783 = vunpack.c.l.b16 %v181
  %v784 = vunpack.c.h.b16 %v181
  %v785 = vunpack.c.l.b16 %v182
  %v786 = vunpack.c.h.b16 %v182
  %v787 = vunpack.c.l.b16 %v183
  %v788 = vunpack.c.h.b16 %v183
  %v789 = vunpack.c.l.b16 %v184
  %v790 = vunpack.c.h.b16 %v184
  %v791 = vunpack.c.l.b16 %v185
  %v792 = vunpack.c.h.b16 %v185
  %v793 = vunpack.c.l.b16 %v186
  %v794 = vunpack.c.h.b16 %v186
  %v795 = vunpack.c.l.b16 %v187
  %v796 = vunpack.c.h.b16 %v187
  %v797 = vunpack.c.l.b16 %v188
  %v798 = vunpack.c.h.b16 %v188
  %v799 = vunpack.c.l.b16 %v189
  %v800 = vunpack.c.h.b16 %v189
  %v801 = vunpack.c.l.b16 %v190
  %v802 = vunpack.c.h.b16 %v190
  %v803 = vunpack.c.l.b16 %v191
  %v804 = vunpack.c.h.b16 %v191
  %v805 = vunpack.c.l.b16 %v192
  %v806 = vunpack.c.h.b16 %v192
  %v807 = vunpack.c.l.b16 %v193
  %v808 = vunpack.c.h.b16 %v193
  %v809 = vunpack.c.l.b16 %v194
  %v810 = vunpack.c.h.b16 %v194
  %v811 = vunpack.c.l.b16 %v195
  %v812 = vunpack.c.h.b16 %v195
  %v813 = vunpack.c.l.b16 %v196
  %v814 = vunpack.c.h.b16 %v196
  %v815 = vunpack.c.l.b16 %v197
  %v816 = vunpack.c.h.b16 %v197
  %v817 = vunpack.c.l.b16 %v198
  %v818 = vunpack.c.h.b16 %v198
  %v819 = vunpack.c.l.b16 %v199
  %v820 = vunpack.c.h.b16 %v199
  %v821 = vunpack.c.l.b16 %v200
  %v822 = vunpack.c.h.b16 %v200
  %v823 = vunpack.c.l.b16 %v201
  %v824 = vunpack.c.h.b16 %v201
  %v825 = vunpack.c.l.b16 %v202
  %v826 = vunpack.c.h.b16 %v202
  %v827 = vunpack.c.l.b16 %v203
  %v828 = vunpack.c.h.b16 %v203
  %v829 = vunpack.c.l.b16 %v204
  %v830 = vunpack.c.h.b16 %v204
  %v831 = vunpack.c.l.b16 %v205
  %v832 = vunpack.c.h.b16 %v205
  %v833 = vunpack.c.l.b16 %v206
  %v834 = vunpack.c.h.b16 %v206
  %v835 = vunpack.c.l.b16 %v207
  %v836 = vunpack.c.h.b16 %v207
  %v837 = vunpack.c.l.b16 %v208
  %v838 = vunpack.c.h.b16 %v208
  %v839 = vunpack.c.l.b16 %v209
  %v840 = vunpack.c.h.b16 %v209
  %v841 = vunpack.c.l.b16 %v210
  %v842 = vunpack.c.h.b16 %v210
  %v843 = vunpack.c.l.b16 %v211
  %v844 = vunpack.c.h.b16 %v211
  %v845 = vunpack.c.l.b16 %v212
  %v846 = vunpack.c.h.b16 %v212
  %v847 = vunpack.c.l.b16 %v213
  %v848 = vunpack.c.h.b16 %v213
  %v849 = vunpack.c.l.b16 %v214
  %v850 = vunpack.c.h.b16 %v214
  %v851 = vunpack.c.l.b16 %v215
  %v852 = vunpack.c.h.b16 %v215
  %v853 = vunpack.c.l.b16 %v216
  %v854 = vunpack.c.h.b16 %v216
  %v855 = vunpack.c.l.b16 %v217
  %v856 = vunpack.c.h.b16 %v217
  %v857 = vunpack.c.l.b16 %v218
  %v858 = vunpack.c.h.b16 %v218
  %v859 = vunpack.c.l.b16 %v219
  %v860 = vunpack.c.h.b16 %v219
  %v861 = vunpack.c.l.b16 %v220
  %v862 = vunpack.c.h.b16 %v220
  %v863 = vunpack.c.l.b16 %v221
  %v864 = vunpack.c.h.b16 %v221
  %v865 = vunpack.c.l.b16 %v222
  %v866 = vunpack.c.h.b16 %v222
  %v867 = vunpack.c.l.b16 %v223
  %v868 = vunpack.c.h.b16 %v223
  %v869 = vunpack.c.l.b16 %v224
  %v870 = vunpack.c.h.b16 %v224
  %v871 = vpack.c.b16 %v475, %v471
  %v872 = vpack.c.b16 %v476, %v472
  %v873 = vpack.c.b16 %v477, %v473
  %v874 = vpack.c.b16 %v478, %v474
  %v875 = vpack.c.b16 %v483, %v479
  %v876 = vpack.c.b16 %v484, %v480
  %v877 = vpack.c.b16 %v485, %v481
  %v878 = vpack.c.b16 %v486, %v482
  %v879 = vpack.c.b16 %v491, %v487
  %v880 = vpack.c.b16 %v492, %v488
  %v881 = vpack.c.b16 %v493, %v489
  %v882 = vpack.c.b16 %v494, %v490
  %v883 = vpack.c.b16 %v499, %v495
  %v884 = vpack.c.b16 %v500, %v496
  %v885 = vpack.c.b16 %v501, %v497
  %v886 = vpack.c.b16 %v502, %v498
  %v887 = vpack.c.b16 %v507, %v503
  %v888 = vpack.c.b16 %v508, %v504
  %v889 = vpack.c.b16 %v509, %v505
  %v890 = vpack.c.b16 %v510, %v506
  %v891 = vpack.c.b16 %v515, %v511
  %v892 = vpack.c.b16 %v516, %v512
  %v893 = vpack.c.b16 %v517, %v513
  %v894 = vpack.c.b16 %v518, %v514
  %v895 = vpack.c.b16 %v523, %v519
  %v896 = vpack.c.b16 %v524, %v520
  %v897 = vpack.c.b16 %v525, %v521
  %v898 = vpack.c.b16 %v526, %v522
  %v899 = vpack.c.b16 %v531, %v527
  %v900 = vpack.c.b16 %v532, %v528
  %v901 = vpack.c.b16 %v533, %v529
  %v902 = vpack.c.b16 %v534, %v530
  %v903 = vpack.c.b16 %v539, %v535
  %v904 = vpack.c.b16 %v540, %v536
  %v905 = vpack.c.b16 %v541, %v537
  %v906 = vpack.c.b16 %v542, %v538
  %v907 = vpack.c.b16 %v547, %v543
  %v908 = vpack.c.b16 %v548, %v544
  %v909 = vpack.c.b16 %v549, %v545
  %v910 = vpack.c.b16 %v550, %v546
  %v911 = vpack.c.b16 %v555, %v551
  %v912 = vpack.c.b16 %v556, %v552
  %v913 = vpack.c.b16 %v557, %v553
  %v914 = vpack.c.b16 %v558, %v554
  %v915 = vpack.c.b16 %v563, %v559
  %v916 = vpack.c.b16 %v564, %v560
  %v917 = vpack.c.b16 %v565, %v561
  %v918 = vpack.c.b16 %v566, %v562
  %v919 = vpack.c.b16 %v571, %v567
  %v920 = vpack.c.b16 %v572, %v568
  %v921 = vpack.c.b16 %v573, %v569
  %v922 = vpack.c.b16 %v574, %v570
  %v923 = vpack.c.b16 %v579, %v575
  %v924 = vpack.c.b16 %v580, %v576
  %v925 = vpack.c.b16 %v581, %v577
  %v926 = vpack.c.b16 %v582, %v578
  %v927 = vpack.c.b16 %v587, %v583
  %v928 = vpack.c.b16 %v588, %v584
  %v929 = vpack.c.b16 %v589, %v585
  %v930 = vpack.c.b16 %v590, %v586
  %v931 = vpack.c.b16 %v595, %v591
  %v932 = vpack.c.b16 %v596, %v592
  %v933 = vpack.c.b16 %v597, %v593
  %v934 = vpack.c.b16 %v598, %v594
  %v935 = vpack.c.b16 %v603, %v599
  %v936 = vpack.c.b16 %v604, %v600
  %v937 = vpack.c.b16 %v605, %v601
  %v938 = vpack.c.b16 %v606, %v602
  %v939 = vpack.c.b16 %v611, %v607
  %v940 = vpack.c.b16 %v612, %v608
  %v941 = vpack.c.b16 %v613, %v609
  %v942 = vpack.c.b16 %v614, %v610
  %v943 = vpack.c.b16 %v619, %v615
  %v944 = vpack.c.b16 %v620, %v616
  %v945 = vpack.c.b16 %v621, %v617
  %v946 = vpack.c.b16 %v622, %v618
  %v947 = vpack.c.b16 %v627, %v623
  %v948 = vpack.c.b16 %v628, %v624
  %v949 = vpack.c.b16 %v629, %v625
  %v950 = vpack.c.b16 %v630, %v626
  %v951 = vpack.c.b16 %v635, %v631
  %v952 = vpack.c.b16 %v636, %v632
  %v953 = vpack.c.b16 %v637, %v633
  %v954 = vpack.c.b16 %v638, %v634
  %v955 = vpack.c.b16 %v643, %v639
  %v956 = vpack.c.b16 %v644, %v640
  %v957 = vpack.c.b16 %v645, %v641
  %v958 = vpack.c.b16 %v646, %v642
  %v959 = vpack.c.b16 %v651, %v647
  %v960 = vpack.c.b16 %v652, %v648
  %v961 = vpack.c.b16 %v653, %v649
  %v962 = vpack.c.b16 %v654, %v650
  %v963 = vpack.c.b16 %v659, %v655
  %v964 = vpack.c.b16 %v660, %v656
  %v965 = vpack.c.b16 %v661, %v657
  %v966 = vpack.c.b16 %v662, %v658
  %v967 = vpack.c.b16 %v667, %v663
  %v968 = vpack.c.b16 %v668, %v664
  %v969 = vpack.c.b16 %v669, %v665
  %v970 = vpack.c.b16 %v670, %v666
  %v971 = vpack.c.b16 %v675, %v671
  %v972 = vpack.c.b16 %v676, %v672
  %v973 = vpack.c.b16 %v677, %v673
  %v974 = vpack.c.b16 %v678, %v674
  %v975 = vpack.c.b16 %v683, %v679
  %v976 = vpack.c.b16 %v684, %v680
  %v977 = vpack.c.b16 %v685, %v681
  %v978 = vpack.c.b16 %v686, %v682
  %v979 = vpack.c.b16 %v691, %v687
  %v980 = vpack.c.b16 %v692, %v688
  %v981 = vpack.c.b16 %v693, %v689
  %v982 = vpack.c.b16 %v694, %v690
  %v983 = vpack.c.b16 %v699, %v695
  %v984 = vpack.c.b16 %v700, %v696
  %v985 = vpack.c.b16 %v701, %v697
  %v986 = vpack.c.b16 %v702, %v698
  %v987 = vpack.c.b16 %v707, %v703
  %v988 = vpack.c.b16 %v708, %v704
  %v989 = vpack.c.b16 %v709, %v705
  %v990 = vpack.c.b16 %v710, %v706
  %v991 = vpack.c.b16 %v715, %v711
  %v992 = vpack.c.b16 %v716, %v712
  %v993 = vpack.c.b16 %v717, %v713
  %v994 = vpack.c.b16 %v718, %v714
  %v995 = vpack.c.b16 %v723, %v719
  %v996 = vpack.c.b16 %v724, %v720
  %v997 = vpack.c.b16 %v725, %v721
  %v998 = vpack.c.b16 %v726, %v722
  %v999 = vpack.c.b16 %v731, %v727
  %v1000 = vpack.c.b16 %v732, %v728
  %v1001 = vpack.c.b16 %v733, %v729
  %v1002 = vpack.c.b16 %v734, %v730
  %v1003 = vpack.c.b16 %v739, %v735
  %v1004 = vpack.c.b16 %v740, %v736
  %v1005 = vpack.c.b16 %v741, %v737
  %v1006 = vpack.c.b16 %v742, %v738
  %v1007 = vpack.c.b16 %v747, %v743
  %v1008 = vpack.c.b16 %v748, %v744
  %v1009 = vpack.c.b16 %v749, %v745
  %v1010 = vpack.c.b16 %v750, %v746
  %v1011 = vpack.c.b16 %v755, %v751
  %v1012 = vpack.c.b16 %v756, %v752
  %v1013 = vpack.c.b16 %v757, %v753
  %v1014 = vpack.c.b16 %v758, %v754
  %v1015 = vpack.c.b16 %v763, %v759
  %v1016 = vpack.c.b16 %v764, %v760
  %v1017 = vpack.c.b16 %v765, %v761
  %v1018 = vpack.c.b16 %v766, %v762
  %v1019 = vpack.c.b16 %v771, %v767
  %v1020 = vpack.c.b16 %v772, %v768
  %v1021 = vpack.c.b16 %v773, %v769
  %v1022 = vpack.c.b16 %v774, %v770
  %v1023 = vpack.c.b16 %v779, %v775
  %v1024 = vpack.c.b16 %v780, %v776
  %v1025 = vpack.c.b16 %v781, %v777
  %v1026 = vpack.c.b16 %v782, %v778
  %v1027 = vpack.c.b16 %v787, %v783
  %v1028 = vpack.c.b16 %v788, %v784
  %v1029 = vpack.c.b16 %v789, %v785
  %v1030 = vpack.c.b16 %v790, %v786
  %v1031 = vpack.c.b16 %v795, %v791
  %v1032 = vpack.c.b16 %v796, %v792
  %v1033 = vpack.c.b16 %v797, %v793
  %v1034 = vpack.c.b16 %v798, %v794
  %v1035 = vpack.c.b16 %v803, %v799
  %v1036 = vpack.c.b16 %v804, %v800
  %v1037 = vpack.c.b16 %v805, %v801
  %v1038 = vpack.c.b16 %v806, %v802
  %v1039 = vpack.c.b16 %v811, %v807
  %v1040 = vpack.c.b16 %v812, %v808
  %v1041 = vpack.c.b16 %v813, %v809
  %v1042 = vpack.c.b16 %v814, %v810
  %v1043 = vpack.c.b16 %v819, %v815
  %v1044 = vpack.c.b16 %v820, %v816
  %v1045 = vpack.c.b16 %v821, %v817
  %v1046 = vpack.c.b16 %v822, %v818
  %v1047 = vpack.c.b16 %v827, %v823
  %v1048 = vpack.c.b16 %v828, %v824
  %v1049 = vpack.c.b16 %v829, %v825
  %v1050 = vpack.c.b16 %v830, %v826
  %v1051 = vpack.c.b16 %v835, %v831
  %v1052 = vpack.c.b16 %v836, %v832
  %v1053 = vpack.c.b16 %v837, %v833
  %v1054 = vpack.c.b16 %v838, %v834
  %v1055 = vpack.c.b16 %v843, %v839
  %v1056 = vpack.c.b16 %v844, %v840
  %v1057 = vpack.c.b16 %v845, %v841
  %v1058 = vpack.c.b16 %v846, %v842
  %v1059 = vpack.c.b16 %v851, %v847
  %v1060 = vpack.c.b16 %v852, %v848
  %v1061 = vpack.c.b16 %v853, %v849
  %v1062 = vpack.c.b16 %v854, %v850
  %v1063 = vpack.c.b16 %v859, %v855
  %v1064 = vpack.c.b16 %v860, %v856
  %v1065 = vpack.c.b16 %v861, %v857
  %v1066 = vpack.c.b16 %v862, %v858
  %v1067 = vpack.c.b16 %v867, %v863
  %v1068 = vpack.c.b16 %v868, %v864
  %v1069 = vpack.c.b16 %v869, %v865
  %v1070 = vpack.c.b16 %v870, %v866
  %vm1267 = vcmask 252928
  %v1269 = vsel %vm1267, %v264, 0
  %vm1271 = vcmask 1046528
  %vm1272 = vcmask 1047552
  %v1273 = vsel %vm1271, 4294967295, 65535
  %v1274 = vsel %vm1272, %v1273, 0
  %v1276 = vand.u32 %v1067, %v1274
  %v1279 = vand.u32 %v1068, %v1274
  %v1282 = vand.u32 %v1069, %v1274
  %v1285 = vand.u32 %v1070, %v1274
  %1287 = vmatprep.subr.bf16.mxu0 %v900
  %1288 = vmatpush1.bf16.msra.mxu0 %v899
  %1289 = vmatprep.subr.bf16.mxu0 %v896
  %1290 = vmatpush1.bf16.msra.mxu0 %v895
  %1291 = vmatprep.subr.bf16.mxu0 %v892
  %1292 = vmatpush1.bf16.msra.mxu0 %v891
  %1293 = vmatprep.subr.bf16.mxu0 %v888
  %1294 = vmatpush1.bf16.msra.mxu0 %v887
  %1295 = vmatprep.subr.bf16.mxu0 %v884
  %1296 = vmatpush1.bf16.msra.mxu0 %v883
  %1297 = vmatprep.subr.bf16.mxu0 %v880
  %1298 = vmatpush1.bf16.msra.mxu0 %v879
  %1299 = vmatprep.subr.bf16.mxu0 %v876
  %1300 = vmatpush1.bf16.msra.mxu0 %v875
  %1301 = vmatprep.subr.bf16.mxu0 %v872
  %1302 = vmatpush1.bf16.msra.mxu0 %v871
  %1303 = vmatprep.subr.bf16.mxu0 %v932
  %1304 = vmatpush2.bf16.msra.mxu0 %v931
  %1305 = vmatprep.subr.bf16.mxu0 %v928
  %1306 = vmatpush2.bf16.msra.mxu0 %v927
  %1307 = vmatprep.subr.bf16.mxu0 %v924
  %1308 = vmatpush2.bf16.msra.mxu0 %v923
  %1309 = vmatprep.subr.bf16.mxu0 %v920
  %1310 = vmatpush2.bf16.msra.mxu0 %v919
  %1311 = vmatprep.subr.bf16.mxu0 %v916
  %1312 = vmatpush2.bf16.msra.mxu0 %v915
  %1313 = vmatprep.subr.bf16.mxu0 %v912
  %1314 = vmatpush2.bf16.msra.mxu0 %v911
  %1315 = vmatprep.subr.bf16.mxu0 %v908
  %1316 = vmatpush2.bf16.msra.mxu0 %v907
  %1317 = vmatprep.subr.bf16.mxu0 %v904
  %1318 = vmatpush2.bf16.msra.mxu0 %v903
  %1319 = vmatprep.mubr.bf16.mxu0 %v259
  %1320 = vmatmul.mubr.bf16.gmra.mxu0 %v258
  %v1321 = vpop.f32.mrf.mxu0
  %v1322 = vadd.f32 %v230, %v1321
  %v1323 = vpop.f32.mrf.mxu0
  %v1324 = vadd.f32 %v234, %v1323
  %v1325 = vpop.f32.mrf.mxu0
  %v1326 = vpop.f32.mrf.mxu0
  %1327 = vdwg.mxu0
  %1328 = vmatprep.subr.bf16.mxu0 %v964
  %1329 = vmatpush1.bf16.msra.mxu0 %v963
  %1330 = vmatprep.subr.bf16.mxu0 %v960
  %1331 = vmatpush1.bf16.msra.mxu0 %v959
  %1332 = vmatprep.subr.bf16.mxu0 %v956
  %1333 = vmatpush1.bf16.msra.mxu0 %v955
  %1334 = vmatprep.subr.bf16.mxu0 %v952
  %1335 = vmatpush1.bf16.msra.mxu0 %v951
  %1336 = vmatprep.subr.bf16.mxu0 %v948
  %1337 = vmatpush1.bf16.msra.mxu0 %v947
  %1338 = vmatprep.subr.bf16.mxu0 %v944
  %1339 = vmatpush1.bf16.msra.mxu0 %v943
  %1340 = vmatprep.subr.bf16.mxu0 %v940
  %1341 = vmatpush1.bf16.msra.mxu0 %v939
  %1342 = vmatprep.subr.bf16.mxu0 %v936
  %1343 = vmatpush1.bf16.msra.mxu0 %v935
  %1344 = vmatprep.subr.bf16.mxu0 %v996
  %1345 = vmatpush2.bf16.msra.mxu0 %v995
  %1346 = vmatprep.subr.bf16.mxu0 %v992
  %1347 = vmatpush2.bf16.msra.mxu0 %v991
  %1348 = vmatprep.subr.bf16.mxu0 %v988
  %1349 = vmatpush2.bf16.msra.mxu0 %v987
  %1350 = vmatprep.subr.bf16.mxu0 %v984
  %1351 = vmatpush2.bf16.msra.mxu0 %v983
  %1352 = vmatprep.subr.bf16.mxu0 %v980
  %1353 = vmatpush2.bf16.msra.mxu0 %v979
  %1354 = vmatprep.subr.bf16.mxu0 %v976
  %1355 = vmatpush2.bf16.msra.mxu0 %v975
  %1356 = vmatprep.subr.bf16.mxu0 %v972
  %1357 = vmatpush2.bf16.msra.mxu0 %v971
  %1358 = vmatprep.subr.bf16.mxu0 %v968
  %1359 = vmatpush2.bf16.msra.mxu0 %v967
  %1360 = vmatprep.mubr.bf16.mxu0 %v261
  %1361 = vmatmul.mubr.bf16.gmra.mxu0 %v260
  %v1362 = vpop.f32.mrf.mxu0
  %v1363 = vadd.f32 %v1322, %v1362
  %v1364 = vpop.f32.mrf.mxu0
  %v1365 = vadd.f32 %v1324, %v1364
  %v1366 = vpop.f32.mrf.mxu0
  %v1367 = vpop.f32.mrf.mxu0
  %1368 = vdwg.mxu0
  %1369 = vmatprep.subr.bf16.mxu0 %v1028
  %1370 = vmatpush1.bf16.msra.mxu0 %v1027
  %1371 = vmatprep.subr.bf16.mxu0 %v1024
  %1372 = vmatpush1.bf16.msra.mxu0 %v1023
  %1373 = vmatprep.subr.bf16.mxu0 %v1020
  %1374 = vmatpush1.bf16.msra.mxu0 %v1019
  %1375 = vmatprep.subr.bf16.mxu0 %v1016
  %1376 = vmatpush1.bf16.msra.mxu0 %v1015
  %1377 = vmatprep.subr.bf16.mxu0 %v1012
  %1378 = vmatpush1.bf16.msra.mxu0 %v1011
  %1379 = vmatprep.subr.bf16.mxu0 %v1008
  %1380 = vmatpush1.bf16.msra.mxu0 %v1007
  %1381 = vmatprep.subr.bf16.mxu0 %v1004
  %1382 = vmatpush1.bf16.msra.mxu0 %v1003
  %1383 = vmatprep.subr.bf16.mxu0 %v1000
  %1384 = vmatpush1.bf16.msra.mxu0 %v999
  %1385 = vmatprep.subr.bf16.mxu0 %v1060
  %1386 = vmatpush2.bf16.msra.mxu0 %v1059
  %1387 = vmatprep.subr.bf16.mxu0 %v1056
  %1388 = vmatpush2.bf16.msra.mxu0 %v1055
  %1389 = vmatprep.subr.bf16.mxu0 %v1052
  %1390 = vmatpush2.bf16.msra.mxu0 %v1051
  %1391 = vmatprep.subr.bf16.mxu0 %v1048
  %1392 = vmatpush2.bf16.msra.mxu0 %v1047
  %1393 = vmatprep.subr.bf16.mxu0 %v1044
  %1394 = vmatpush2.bf16.msra.mxu0 %v1043
  %1395 = vmatprep.subr.bf16.mxu0 %v1040
  %1396 = vmatpush2.bf16.msra.mxu0 %v1039
  %1397 = vmatprep.subr.bf16.mxu0 %v1036
  %1398 = vmatpush2.bf16.msra.mxu0 %v1035
  %1399 = vmatprep.subr.bf16.mxu0 %v1032
  %1400 = vmatpush2.bf16.msra.mxu0 %v1031
  %1401 = vmatprep.mubr.bf16.mxu0 %v263
  %1402 = vmatmul.mubr.bf16.gmra.mxu0 %v262
  %v1403 = vpop.f32.mrf.mxu0
  %v1404 = vadd.f32 %v1363, %v1403
  %v1405 = vpop.f32.mrf.mxu0
  %v1406 = vadd.f32 %v1365, %v1405
  %v1407 = vpop.f32.mrf.mxu0
  %v1408 = vpop.f32.mrf.mxu0
  %1409 = vdwg.mxu0
  %1410 = vmatprep.subr.bf16.mxu0 0
  %1411 = vmatpush1.bf16.msra.mxu0 0
  %1412 = vmatprep.subr.bf16.mxu0 0
  %1413 = vmatpush1.bf16.msra.mxu0 0
  %1414 = vmatprep.subr.bf16.mxu0 0
  %1415 = vmatpush1.bf16.msra.mxu0 0
  %1416 = vmatprep.subr.bf16.mxu0 0
  %1417 = vmatpush1.bf16.msra.mxu0 0
  %1418 = vmatprep.subr.bf16.mxu0 0
  %1419 = vmatpush1.bf16.msra.mxu0 0
  %1420 = vmatprep.subr.bf16.mxu0 0
  %1421 = vmatpush1.bf16.msra.mxu0 0
  %1422 = vmatprep.subr.bf16.mxu0 %v1279
  %1423 = vmatpush1.bf16.msra.mxu0 %v1276
  %1424 = vmatprep.subr.bf16.mxu0 %v1064
  %1425 = vmatpush1.bf16.msra.mxu0 %v1063
  %1426 = vmatprep.subr.bf16.mxu0 0
  %1427 = vmatpush2.bf16.msra.mxu0 0
  %1428 = vmatprep.subr.bf16.mxu0 0
  %1429 = vmatpush2.bf16.msra.mxu0 0
  %1430 = vmatprep.subr.bf16.mxu0 0
  %1431 = vmatpush2.bf16.msra.mxu0 0
  %1432 = vmatprep.subr.bf16.mxu0 0
  %1433 = vmatpush2.bf16.msra.mxu0 0
  %1434 = vmatprep.subr.bf16.mxu0 0
  %1435 = vmatpush2.bf16.msra.mxu0 0
  %1436 = vmatprep.subr.bf16.mxu0 0
  %1437 = vmatpush2.bf16.msra.mxu0 0
  %1438 = vmatprep.subr.bf16.mxu0 0
  %1439 = vmatpush2.bf16.msra.mxu0 0
  %1440 = vmatprep.subr.bf16.mxu0 0
  %1441 = vmatpush2.bf16.msra.mxu0 0
  %1442 = vmatprep.mubr.bf16.mxu0 0
  %1443 = vmatmul.mubr.bf16.gmra.mxu0 %v1269
  %v1444 = vpop.f32.mrf.mxu0
  %v1445 = vadd.f32 %v1404, %v1444
  %v1446 = vpop.f32.mrf.mxu0
  %v1447 = vadd.f32 %v1406, %v1446
  %v1448 = vpop.f32.mrf.mxu0
  %v1449 = vpop.f32.mrf.mxu0
  %1450 = vdwg.mxu0
  %1451 = vmatprep.subr.bf16.mxu0 %v902
  %1452 = vmatpush1.bf16.msra.mxu0 %v901
  %1453 = vmatprep.subr.bf16.mxu0 %v898
  %1454 = vmatpush1.bf16.msra.mxu0 %v897
  %1455 = vmatprep.subr.bf16.mxu0 %v894
  %1456 = vmatpush1.bf16.msra.mxu0 %v893
  %1457 = vmatprep.subr.bf16.mxu0 %v890
  %1458 = vmatpush1.bf16.msra.mxu0 %v889
  %1459 = vmatprep.subr.bf16.mxu0 %v886
  %1460 = vmatpush1.bf16.msra.mxu0 %v885
  %1461 = vmatprep.subr.bf16.mxu0 %v882
  %1462 = vmatpush1.bf16.msra.mxu0 %v881
  %1463 = vmatprep.subr.bf16.mxu0 %v878
  %1464 = vmatpush1.bf16.msra.mxu0 %v877
  %1465 = vmatprep.subr.bf16.mxu0 %v874
  %1466 = vmatpush1.bf16.msra.mxu0 %v873
  %1467 = vmatprep.subr.bf16.mxu0 %v934
  %1468 = vmatpush2.bf16.msra.mxu0 %v933
  %1469 = vmatprep.subr.bf16.mxu0 %v930
  %1470 = vmatpush2.bf16.msra.mxu0 %v929
  %1471 = vmatprep.subr.bf16.mxu0 %v926
  %1472 = vmatpush2.bf16.msra.mxu0 %v925
  %1473 = vmatprep.subr.bf16.mxu0 %v922
  %1474 = vmatpush2.bf16.msra.mxu0 %v921
  %1475 = vmatprep.subr.bf16.mxu0 %v918
  %1476 = vmatpush2.bf16.msra.mxu0 %v917
  %1477 = vmatprep.subr.bf16.mxu0 %v914
  %1478 = vmatpush2.bf16.msra.mxu0 %v913
  %1479 = vmatprep.subr.bf16.mxu0 %v910
  %1480 = vmatpush2.bf16.msra.mxu0 %v909
  %1481 = vmatprep.subr.bf16.mxu0 %v906
  %1482 = vmatpush2.bf16.msra.mxu0 %v905
  %1483 = vmatprep.mubr.bf16.mxu0 %v259
  %1484 = vmatmul.mubr.bf16.gmra.mxu0 %v258
  %v1485 = vpop.f32.mrf.mxu0
  %v1486 = vadd.f32 %v238, %v1485
  %v1487 = vpop.f32.mrf.mxu0
  %v1488 = vadd.f32 %v242, %v1487
  %v1489 = vpop.f32.mrf.mxu0
  %v1490 = vpop.f32.mrf.mxu0
  %1491 = vdwg.mxu0
  %1492 = vmatprep.subr.bf16.mxu0 %v966
  %1493 = vmatpush1.bf16.msra.mxu0 %v965
  %1494 = vmatprep.subr.bf16.mxu0 %v962
  %1495 = vmatpush1.bf16.msra.mxu0 %v961
  %1496 = vmatprep.subr.bf16.mxu0 %v958
  %1497 = vmatpush1.bf16.msra.mxu0 %v957
  %1498 = vmatprep.subr.bf16.mxu0 %v954
  %1499 = vmatpush1.bf16.msra.mxu0 %v953
  %1500 = vmatprep.subr.bf16.mxu0 %v950
  %1501 = vmatpush1.bf16.msra.mxu0 %v949
  %1502 = vmatprep.subr.bf16.mxu0 %v946
  %1503 = vmatpush1.bf16.msra.mxu0 %v945
  %1504 = vmatprep.subr.bf16.mxu0 %v942
  %1505 = vmatpush1.bf16.msra.mxu0 %v941
  %1506 = vmatprep.subr.bf16.mxu0 %v938
  %1507 = vmatpush1.bf16.msra.mxu0 %v937
  %1508 = vmatprep.subr.bf16.mxu0 %v998
  %1509 = vmatpush2.bf16.msra.mxu0 %v997
  %1510 = vmatprep.subr.bf16.mxu0 %v994
  %1511 = vmatpush2.bf16.msra.mxu0 %v993
  %1512 = vmatprep.subr.bf16.mxu0 %v990
  %1513 = vmatpush2.bf16.msra.mxu0 %v989
  %1514 = vmatprep.subr.bf16.mxu0 %v986
  %1515 = vmatpush2.bf16.msra.mxu0 %v985
  %1516 = vmatprep.subr.bf16.mxu0 %v982
  %1517 = vmatpush2.bf16.msra.mxu0 %v981
  %1518 = vmatprep.subr.bf16.mxu0 %v978
  %1519 = vmatpush2.bf16.msra.mxu0 %v977
  %1520 = vmatprep.subr.bf16.mxu0 %v974
  %1521 = vmatpush2.bf16.msra.mxu0 %v973
  %1522 = vmatprep.subr.bf16.mxu0 %v970
  %1523 = vmatpush2.bf16.msra.mxu0 %v969
  %1524 = vmatprep.mubr.bf16.mxu0 %v261
  %1525 = vmatmul.mubr.bf16.gmra.mxu0 %v260
  %v1526 = vpop.f32.mrf.mxu0
  %v1527 = vadd.f32 %v1486, %v1526
  %v1528 = vpop.f32.mrf.mxu0
  %v1529 = vadd.f32 %v1488, %v1528
  %v1530 = vpop.f32.mrf.mxu0
  %v1531 = vpop.f32.mrf.mxu0
  %1532 = vdwg.mxu0
  %1533 = vmatprep.subr.bf16.mxu0 %v1030
  %1534 = vmatpush1.bf16.msra.mxu0 %v1029
  %1535 = vmatprep.subr.bf16.mxu0 %v1026
  %1536 = vmatpush1.bf16.msra.mxu0 %v1025
  %1537 = vmatprep.subr.bf16.mxu0 %v1022
  %1538 = vmatpush1.bf16.msra.mxu0 %v1021
  %1539 = vmatprep.subr.bf16.mxu0 %v1018
  %1540 = vmatpush1.bf16.msra.mxu0 %v1017
  %1541 = vmatprep.subr.bf16.mxu0 %v1014
  %1542 = vmatpush1.bf16.msra.mxu0 %v1013
  %1543 = vmatprep.subr.bf16.mxu0 %v1010
  %1544 = vmatpush1.bf16.msra.mxu0 %v1009
  %1545 = vmatprep.subr.bf16.mxu0 %v1006
  %1546 = vmatpush1.bf16.msra.mxu0 %v1005
  %1547 = vmatprep.subr.bf16.mxu0 %v1002
  %1548 = vmatpush1.bf16.msra.mxu0 %v1001
  %1549 = vmatprep.subr.bf16.mxu0 %v1062
  %1550 = vmatpush2.bf16.msra.mxu0 %v1061
  %1551 = vmatprep.subr.bf16.mxu0 %v1058
  %1552 = vmatpush2.bf16.msra.mxu0 %v1057
  %1553 = vmatprep.subr.bf16.mxu0 %v1054
  %1554 = vmatpush2.bf16.msra.mxu0 %v1053
  %1555 = vmatprep.subr.bf16.mxu0 %v1050
  %1556 = vmatpush2.bf16.msra.mxu0 %v1049
  %1557 = vmatprep.subr.bf16.mxu0 %v1046
  %1558 = vmatpush2.bf16.msra.mxu0 %v1045
  %1559 = vmatprep.subr.bf16.mxu0 %v1042
  %1560 = vmatpush2.bf16.msra.mxu0 %v1041
  %1561 = vmatprep.subr.bf16.mxu0 %v1038
  %1562 = vmatpush2.bf16.msra.mxu0 %v1037
  %1563 = vmatprep.subr.bf16.mxu0 %v1034
  %1564 = vmatpush2.bf16.msra.mxu0 %v1033
  %1565 = vmatprep.mubr.bf16.mxu0 %v263
  %1566 = vmatmul.mubr.bf16.gmra.mxu0 %v262
  %v1567 = vpop.f32.mrf.mxu0
  %v1568 = vadd.f32 %v1527, %v1567
  %v1569 = vpop.f32.mrf.mxu0
  %v1570 = vadd.f32 %v1529, %v1569
  %v1571 = vpop.f32.mrf.mxu0
  %v1572 = vpop.f32.mrf.mxu0
  %1573 = vdwg.mxu0
  %1574 = vmatprep.subr.bf16.mxu0 0
  %1575 = vmatpush1.bf16.msra.mxu0 0
  %1576 = vmatprep.subr.bf16.mxu0 0
  %1577 = vmatpush1.bf16.msra.mxu0 0
  %1578 = vmatprep.subr.bf16.mxu0 0
  %1579 = vmatpush1.bf16.msra.mxu0 0
  %1580 = vmatprep.subr.bf16.mxu0 0
  %1581 = vmatpush1.bf16.msra.mxu0 0
  %1582 = vmatprep.subr.bf16.mxu0 0
  %1583 = vmatpush1.bf16.msra.mxu0 0
  %1584 = vmatprep.subr.bf16.mxu0 0
  %1585 = vmatpush1.bf16.msra.mxu0 0
  %1586 = vmatprep.subr.bf16.mxu0 %v1285
  %1587 = vmatpush1.bf16.msra.mxu0 %v1282
  %1588 = vmatprep.subr.bf16.mxu0 %v1066
  %1589 = vmatpush1.bf16.msra.mxu0 %v1065
  %1590 = vmatprep.subr.bf16.mxu0 0
  %1591 = vmatpush2.bf16.msra.mxu0 0
  %1592 = vmatprep.subr.bf16.mxu0 0
  %1593 = vmatpush2.bf16.msra.mxu0 0
  %1594 = vmatprep.subr.bf16.mxu0 0
  %1595 = vmatpush2.bf16.msra.mxu0 0
  %1596 = vmatprep.subr.bf16.mxu0 0
  %1597 = vmatpush2.bf16.msra.mxu0 0
  %1598 = vmatprep.subr.bf16.mxu0 0
  %1599 = vmatpush2.bf16.msra.mxu0 0
  %1600 = vmatprep.subr.bf16.mxu0 0
  %1601 = vmatpush2.bf16.msra.mxu0 0
  %1602 = vmatprep.subr.bf16.mxu0 0
  %1603 = vmatpush2.bf16.msra.mxu0 0
  %1604 = vmatprep.subr.bf16.mxu0 0
  %1605 = vmatpush2.bf16.msra.mxu0 0
  %1606 = vmatprep.mubr.bf16.mxu0 0
  %1607 = vmatmul.mubr.bf16.gmra.mxu0 %v1269
  %v1608 = vpop.f32.mrf.mxu0
  %v1609 = vadd.f32 %v1568, %v1608
  %v1610 = vpop.f32.mrf.mxu0
  %v1611 = vadd.f32 %v1570, %v1610
  %v1612 = vpop.f32.mrf.mxu0
  %v1613 = vpop.f32.mrf.mxu0
  %1614 = vdwg.mxu0
  %v1615 = vmax.f32 %v1445, 0.0
  %v1616 = vmax.f32 %v1447, 0.0
  %v1617 = vmax.f32 %v1609, 0.0
  %v1618 = vmax.f32 %v1611, 0.0
  %v1619 = vpack.c.bf16 %v1615, %v1615
  %v1620 = vpack.c.bf16 %v1616, %v1616
  %v1621 = vpack.c.bf16 %v1617, %v1617
  %v1622 = vpack.c.bf16 %v1618, %v1618
  %v1623 = vld [vmem:[%s3] sm:$0xf]
  %v1624 = vld [vmem:[%s3 + $0x4] sm:$0xf]
  %v1625 = vld [vmem:[%s3 + $0x8] sm:$0xf]
  %v1626 = vld [vmem:[%s3 + $0xc] sm:$0xf]
  %v1627 = vld [vmem:[%s3 + $0x10] sm:$0xf]
  %v1628 = vld [vmem:[%s3 + $0x14] sm:$0xf]
  %v1629 = vld [vmem:[%s3 + $0x18] sm:$0xf]
  %v1630 = vld [vmem:[%s3 + $0x1c] sm:$0xf]
  %v1631 = vld [vmem:[%s3 + $0x20] sm:$0xf]
  %v1632 = vld [vmem:[%s3 + $0x24] sm:$0xf]
  %v1633 = vld [vmem:[%s3 + $0x28] sm:$0xf]
  %v1634 = vld [vmem:[%s3 + $0x2c] sm:$0xf]
  %v1635 = vld [vmem:[%s3 + $0x30] sm:$0xf]
  %v1636 = vld [vmem:[%s3 + $0x34] sm:$0xf]
  %v1637 = vld [vmem:[%s3 + $0x38] sm:$0xf]
  %v1638 = vld [vmem:[%s3 + $0x3c] sm:$0xf]
  %v1639 = vld [vmem:[%s3 + $0x40] sm:$0xf]
  %v1640 = vld [vmem:[%s3 + $0x44] sm:$0xf]
  %v1641 = vld [vmem:[%s3 + $0x48] sm:$0xf]
  %v1642 = vld [vmem:[%s3 + $0x4c] sm:$0xf]
  %v1643 = vld [vmem:[%s3 + $0x50] sm:$0xf]
  %v1644 = vld [vmem:[%s3 + $0x54] sm:$0xf]
  %v1645 = vld [vmem:[%s3 + $0x58] sm:$0xf]
  %v1646 = vld [vmem:[%s3 + $0x5c] sm:$0xf]
  %v1647 = vld [vmem:[%s3 + $0x60] sm:$0xf]
  %v1648 = vld [vmem:[%s3 + $0x64] sm:$0xf]
  %v1649 = vld [vmem:[%s3 + $0x68] sm:$0xf]
  %v1650 = vld [vmem:[%s3 + $0x6c] sm:$0xf]
  %v1651 = vld [vmem:[%s3 + $0x70] sm:$0xf]
  %v1652 = vld [vmem:[%s3 + $0x74] sm:$0xf]
  %v1653 = vld [vmem:[%s3 + $0x78] sm:$0xf]
  %v1654 = vld [vmem:[%s3 + $0x7c] sm:$0xf]
  %v1655 = vld [vmem:[%s3 + $0x80] sm:$0xf]
  %v1656 = vld [vmem:[%s3 + $0x84] sm:$0xf]
  %v1657 = vld [vmem:[%s3 + $0x88] sm:$0xf]
  %v1658 = vld [vmem:[%s3 + $0x8c] sm:$0xf]
  %v1659 = vld [vmem:[%s3 + $0x90] sm:$0xf]
  %v1660 = vld [vmem:[%s3 + $0x94] sm:$0xf]
  %v1661 = vld [vmem:[%s3 + $0x98] sm:$0xf]
  %v1662 = vld [vmem:[%s3 + $0x9c] sm:$0xf]
  %v1663 = vld [vmem:[%s3 + $0xa0] sm:$0xf]
  %v1664 = vld [vmem:[%s3 + $0xa4] sm:$0xf]
  %v1665 = vld [vmem:[%s3 + $0xa8] sm:$0xf]
  %v1666 = vld [vmem:[%s3 + $0xac] sm:$0xf]
  %v1667 = vld [vmem:[%s3 + $0xb0] sm:$0xf]
  %v1668 = vld [vmem:[%s3 + $0xb4] sm:$0xf]
  %v1669 = vld [vmem:[%s3 + $0xb8] sm:$0xf]
  %v1670 = vld [vmem:[%s3 + $0xbc] sm:$0xf]
  %v1671 = vld [vmem:[%s3 + $0xc0] sm:$0xf]
  %v1672 = vld [vmem:[%s3 + $0xc4] sm:$0xf]
  %v1673 = vld [vmem:[%s3 + $0xc8] sm:$0xf]
  %v1674 = vld [vmem:[%s3 + $0xcc] sm:$0xf]
  %v1675 = vld [vmem:[%s3 + $0xd0] sm:$0xf]
  %v1676 = vld [vmem:[%s3 + $0xd4] sm:$0xf]
  %v1677 = vld [vmem:[%s3 + $0xd8] sm:$0xf]
  %v1678 = vld [vmem:[%s3 + $0xdc] sm:$0xf]
  %v1679 = vld [vmem:[%s3 + $0xe0] sm:$0x1]
  %v1680 = vld [vmem:[%s4] sm:$0x1]
  %v1682 = vlaneseq
  %v1683 = vshrl.u32 %v1682, 7
  %v1684 = vsub.s32 0, %v1683
  %v1685 = vrot.slane %v1680, %v1684
  %v1744 = vunpack.c.l.b16 %v1623
  %v1745 = vunpack.c.l.b16 %v1624
  %v1746 = vunpack.c.l.b16 %v1625
  %v1747 = vunpack.c.l.b16 %v1626
  %v1748 = vunpack.c.l.b16 %v1627
  %v1749 = vunpack.c.l.b16 %v1628
  %v1750 = vunpack.c.l.b16 %v1629
  %v1751 = vunpack.c.l.b16 %v1630
  %v1752 = vunpack.c.l.b16 %v1631
  %v1753 = vunpack.c.l.b16 %v1632
  %v1754 = vunpack.c.l.b16 %v1633
  %v1755 = vunpack.c.l.b16 %v1634
  %v1756 = vunpack.c.l.b16 %v1635
  %v1757 = vunpack.c.l.b16 %v1636
  %v1758 = vunpack.c.l.b16 %v1637
  %v1759 = vunpack.c.l.b16 %v1638
  %v1760 = vunpack.c.l.b16 %v1639
  %v1761 = vunpack.c.l.b16 %v1640
  %v1762 = vunpack.c.l.b16 %v1641
  %v1763 = vunpack.c.l.b16 %v1642
  %v1764 = vunpack.c.l.b16 %v1643
  %v1765 = vunpack.c.l.b16 %v1644
  %v1766 = vunpack.c.l.b16 %v1645
  %v1767 = vunpack.c.l.b16 %v1646
  %v1768 = vunpack.c.l.b16 %v1647
  %v1769 = vunpack.c.l.b16 %v1648
  %v1770 = vunpack.c.l.b16 %v1649
  %v1771 = vunpack.c.l.b16 %v1650
  %v1772 = vunpack.c.l.b16 %v1651
  %v1773 = vunpack.c.l.b16 %v1652
  %v1774 = vunpack.c.l.b16 %v1653
  %v1775 = vunpack.c.l.b16 %v1654
  %v1776 = vunpack.c.l.b16 %v1655
  %v1777 = vunpack.c.l.b16 %v1656
  %v1778 = vunpack.c.l.b16 %v1657
  %v1779 = vunpack.c.l.b16 %v1658
  %v1780 = vunpack.c.l.b16 %v1659
  %v1781 = vunpack.c.l.b16 %v1660
  %v1782 = vunpack.c.l.b16 %v1661
  %v1783 = vunpack.c.l.b16 %v1662
  %v1784 = vunpack.c.l.b16 %v1663
  %v1785 = vunpack.c.l.b16 %v1664
  %v1786 = vunpack.c.l.b16 %v1665
  %v1787 = vunpack.c.l.b16 %v1666
  %v1788 = vunpack.c.l.b16 %v1667
  %v1789 = vunpack.c.l.b16 %v1668
  %v1790 = vunpack.c.l.b16 %v1669
  %v1791 = vunpack.c.l.b16 %v1670
  %v1792 = vunpack.c.l.b16 %v1671
  %v1793 = vunpack.c.l.b16 %v1672
  %v1794 = vunpack.c.l.b16 %v1673
  %v1795 = vunpack.c.l.b16 %v1674
  %v1796 = vunpack.c.l.b16 %v1675
  %v1797 = vunpack.c.l.b16 %v1676
  %v1798 = vunpack.c.l.b16 %v1677
  %v1799 = vunpack.c.l.b16 %v1678
  %v1800 = vunpack.c.l.b16 %v1679
  %v1801 = vpack.c.b16 %v1745, %v1744
  %v1802 = vpack.c.b16 %v1747, %v1746
  %v1803 = vpack.c.b16 %v1749, %v1748
  %v1804 = vpack.c.b16 %v1751, %v1750
  %v1805 = vpack.c.b16 %v1753, %v1752
  %v1806 = vpack.c.b16 %v1755, %v1754
  %v1807 = vpack.c.b16 %v1757, %v1756
  %v1808 = vpack.c.b16 %v1759, %v1758
  %v1809 = vpack.c.b16 %v1761, %v1760
  %v1810 = vpack.c.b16 %v1763, %v1762
  %v1811 = vpack.c.b16 %v1765, %v1764
  %v1812 = vpack.c.b16 %v1767, %v1766
  %v1813 = vpack.c.b16 %v1769, %v1768
  %v1814 = vpack.c.b16 %v1771, %v1770
  %v1815 = vpack.c.b16 %v1773, %v1772
  %v1816 = vpack.c.b16 %v1775, %v1774
  %v1817 = vpack.c.b16 %v1777, %v1776
  %v1818 = vpack.c.b16 %v1779, %v1778
  %v1819 = vpack.c.b16 %v1781, %v1780
  %v1820 = vpack.c.b16 %v1783, %v1782
  %v1821 = vpack.c.b16 %v1785, %v1784
  %v1822 = vpack.c.b16 %v1787, %v1786
  %v1823 = vpack.c.b16 %v1789, %v1788
  %v1824 = vpack.c.b16 %v1791, %v1790
  %v1825 = vpack.c.b16 %v1793, %v1792
  %v1826 = vpack.c.b16 %v1795, %v1794
  %v1827 = vpack.c.b16 %v1797, %v1796
  %v1828 = vpack.c.b16 %v1799, %v1798
  %v1829 = vpack.c.b16 %v1800, %v1800
  %vm1858 = vcmask 539648
  %v1860 = vsel %vm1858, %v1622, 0
  %vm1862 = vcmask 1040384
  %v1864 = vsel %vm1862, %v1829, 0
  %1866 = vmatprep.subr.bf16.mxu0 0
  %1867 = vmatpush1.bf16.msra.mxu0 %v1808
  %1868 = vmatprep.subr.bf16.mxu0 0
  %1869 = vmatpush1.bf16.msra.mxu0 %v1807
  %1870 = vmatprep.subr.bf16.mxu0 0
  %1871 = vmatpush1.bf16.msra.mxu0 %v1806
  %1872 = vmatprep.subr.bf16.mxu0 0
  %1873 = vmatpush1.bf16.msra.mxu0 %v1805
  %1874 = vmatprep.subr.bf16.mxu0 0
  %1875 = vmatpush1.bf16.msra.mxu0 %v1804
  %1876 = vmatprep.subr.bf16.mxu0 0
  %1877 = vmatpush1.bf16.msra.mxu0 %v1803
  %1878 = vmatprep.subr.bf16.mxu0 0
  %1879 = vmatpush1.bf16.msra.mxu0 %v1802
  %1880 = vmatprep.subr.bf16.mxu0 0
  %1881 = vmatpush1.bf16.msra.mxu0 %v1801
  %1882 = vmatprep.subr.bf16.mxu0 0
  %1883 = vmatpush2.bf16.msra.mxu0 %v1816
  %1884 = vmatprep.subr.bf16.mxu0 0
  %1885 = vmatpush2.bf16.msra.mxu0 %v1815
  %1886 = vmatprep.subr.bf16.mxu0 0
  %1887 = vmatpush2.bf16.msra.mxu0 %v1814
  %1888 = vmatprep.subr.bf16.mxu0 0
  %1889 = vmatpush2.bf16.msra.mxu0 %v1813
  %1890 = vmatprep.subr.bf16.mxu0 0
  %1891 = vmatpush2.bf16.msra.mxu0 %v1812
  %1892 = vmatprep.subr.bf16.mxu0 0
  %1893 = vmatpush2.bf16.msra.mxu0 %v1811
  %1894 = vmatprep.subr.bf16.mxu0 0
  %1895 = vmatpush2.bf16.msra.mxu0 %v1810
  %1896 = vmatprep.subr.bf16.mxu0 0
  %1897 = vmatpush2.bf16.msra.mxu0 %v1809
  %1898 = vmatprep.mubr.bf16.mxu0 %v1620
  %1899 = vmatmul.mubr.bf16.gmra.mxu0 %v1619
  %v1900 = vpop.f32.mrf.mxu0
  %v1901 = vadd.f32 %v1685, %v1900
  %v1902 = vpop.f32.mrf.mxu0
  %v1903 = vpop.f32.mrf.mxu0
  %v1904 = vpop.f32.mrf.mxu0
  %1905 = vdwg.mxu0
  %1906 = vmatprep.subr.bf16.mxu0 0
  %1907 = vmatpush1.bf16.msra.mxu0 %v1824
  %1908 = vmatprep.subr.bf16.mxu0 0
  %1909 = vmatpush1.bf16.msra.mxu0 %v1823
  %1910 = vmatprep.subr.bf16.mxu0 0
  %1911 = vmatpush1.bf16.msra.mxu0 %v1822
  %1912 = vmatprep.subr.bf16.mxu0 0
  %1913 = vmatpush1.bf16.msra.mxu0 %v1821
  %1914 = vmatprep.subr.bf16.mxu0 0
  %1915 = vmatpush1.bf16.msra.mxu0 %v1820
  %1916 = vmatprep.subr.bf16.mxu0 0
  %1917 = vmatpush1.bf16.msra.mxu0 %v1819
  %1918 = vmatprep.subr.bf16.mxu0 0
  %1919 = vmatpush1.bf16.msra.mxu0 %v1818
  %1920 = vmatprep.subr.bf16.mxu0 0
  %1921 = vmatpush1.bf16.msra.mxu0 %v1817
  %1922 = vmatprep.subr.bf16.mxu0 0
  %1923 = vmatpush2.bf16.msra.mxu0 0
  %1924 = vmatprep.subr.bf16.mxu0 0
  %1925 = vmatpush2.bf16.msra.mxu0 0
  %1926 = vmatprep.subr.bf16.mxu0 0
  %1927 = vmatpush2.bf16.msra.mxu0 0
  %1928 = vmatprep.subr.bf16.mxu0 0
  %1929 = vmatpush2.bf16.msra.mxu0 %v1864
  %1930 = vmatprep.subr.bf16.mxu0 0
  %1931 = vmatpush2.bf16.msra.mxu0 %v1828
  %1932 = vmatprep.subr.bf16.mxu0 0
  %1933 = vmatpush2.bf16.msra.mxu0 %v1827
  %1934 = vmatprep.subr.bf16.mxu0 0
  %1935 = vmatpush2.bf16.msra.mxu0 %v1826
  %1936 = vmatprep.subr.bf16.mxu0 0
  %1937 = vmatpush2.bf16.msra.mxu0 %v1825
  %1938 = vmatprep.mubr.bf16.mxu0 %v1860
  %1939 = vmatmul.mubr.bf16.gmra.mxu0 %v1621
  %v1940 = vpop.f32.mrf.mxu0
  %v1941 = vadd.f32 %v1901, %v1940
  %v1942 = vpop.f32.mrf.mxu0
  %v1943 = vpop.f32.mrf.mxu0
  %v1944 = vpop.f32.mrf.mxu0
  %1945 = vdwg.mxu0
  %vm1946 = vcmask 15360
  %1947 = vst.msk [vmem:[%s5] sm:$0xff] %vm1946, %v1941
  // Predicated region
  $region22: #{net_forward.1} parent=0 // pred_check
    _
  $region23: #{net_forward.1} parent=0 // pred_check_branch
    %1949 = sbr.rel (0) target = $region25
  $region24: #{net_forward.1} parent=0 // pred_region
    _
  $region25: #{net_forward.1} parent=0 // pred_fallthru
    _
  // Predicated region
  $region26: #{net_forward.1} parent=0 // pred_check
    _
  $region27: #{net_forward.1} parent=0 // pred_check_branch
    %1951 = sbr.rel (0) target = $region29
  $region28: #{net_forward.1} parent=0 // pred_region
    _
  $region29: #{net_forward.1} parent=0 // pred_fallthru
    _

</llo_original>
